<compile_context>
chip_gen: v6e
topology: v6e:2x2x1
jax: 0.10.0
libtpu: 0.0.40
codegen_flags: <defaults>
</compile_context>

<pallas_src>
import jax
import jax.numpy as jnp
from jax.experimental import pallas as pl
from jax.experimental.pallas import tpu as pltpu


def ncf_kernel(uid_ref, mid_ref,                 # (Bp,) int32 ids in SMEM (scalar prefetch)
               uemb_hbm, memb_hbm,               # embedding tables, raw HBM refs
               w1u_ref, w1m_ref, b1_ref,         # (E,H0), (E,H0), (1,H0)   VMEM
               w2_ref, b2_ref,                   # (H0,H1), (1,H1)          VMEM
               w3_ref,                           # (1,H1)                   VMEM
               b3_ref,                           # (1,1)                    SMEM
               out_ref,                          # (1, tb) lane-dense block VMEM
               ubuf, mbuf, sem):                 # scratch: (tb,E), (tb,E), DMA sems (2,tb)
    tb = ubuf.shape[0]
    base = pl.program_id(0) * tb

    # ---- gather the needed embedding rows HBM -> VMEM (one row-DMA each) ----
    # Issue every copy first, then wait, so the DMAs overlap each other.
    copies = []
    for r in range(tb):
        u = uid_ref[base + r]
        m = mid_ref[base + r]
        cu = pltpu.make_async_copy(uemb_hbm.at[pl.ds(u, 1), :],
                                   ubuf.at[pl.ds(r, 1), :], sem.at[0, r])
        cm = pltpu.make_async_copy(memb_hbm.at[pl.ds(m, 1), :],
                                   mbuf.at[pl.ds(r, 1), :], sem.at[1, r])
        cu.start()
        cm.start()
        copies.append((cu, cm))
    for cu, cm in copies:
        cu.wait()
        cm.wait()

    # ---- MLP: split-w1 avoids the lane-axis concat of [user_emb, movie_emb] ----
    h = (jnp.dot(ubuf[...], w1u_ref[...], preferred_element_type=jnp.float32)
         + jnp.dot(mbuf[...], w1m_ref[...], preferred_element_type=jnp.float32)
         + b1_ref[...])                                            # (tb, H0)
    h = jnp.maximum(h, 0.0)

    h = jnp.dot(h, w2_ref[...], preferred_element_type=jnp.float32) + b2_ref[...]
    h = jnp.maximum(h, 0.0)                                        # (tb, H1)

    # final (H1 -> 1) layer: contract H1 of w3 (1,H1) against H1 of h (tb,H1)
    # -> a lane-dense (1, tb) logit row, stored unmasked into the output block.
    logit = jax.lax.dot_general(w3_ref[...], h, (((1,), (1,)), ((), ())),
                                preferred_element_type=jnp.float32)
    logit = logit + b3_ref[0, 0]                                   # (1, tb)
    out_ref[...] = 1.0 + 4.0 * jax.nn.sigmoid(logit)


def _round_up(x, m):
    return (x + m - 1) // m * m


def ncf_forward(user_id, movie_id, params, block_rows=128):
    """user_id, movie_id: (B,) int ids. Returns (B,) float32 predictions in [1, 5]."""
    B = user_id.shape[0]
    tb = min(block_rows, _round_up(B, 8))
    Bp = _round_up(B, tb)
    num_blocks = Bp // tb

    uid = jnp.zeros((Bp,), jnp.int32).at[:B].set(user_id.astype(jnp.int32))
    mid = jnp.zeros((Bp,), jnp.int32).at[:B].set(movie_id.astype(jnp.int32))

    uemb, memb = params["user_emb"], params["movie_emb"]
    w1u, w1m, b1 = params["w1_user"], params["w1_movie"], params["b1"]
    w2, b2 = params["w2"], params["b2"]
    w3, b3 = params["w3"], params["b3"]
    E = uemb.shape[1]
    H0, H1 = w2.shape

    grid_spec = pltpu.PrefetchScalarGridSpec(
        num_scalar_prefetch=2,
        grid=(num_blocks,),
        in_specs=[
            pl.BlockSpec(memory_space=pl.ANY),                     # user table (HBM)
            pl.BlockSpec(memory_space=pl.ANY),                     # movie table (HBM)
            pl.BlockSpec((E, H0), lambda i, u, m: (0, 0)),         # w1_user
            pl.BlockSpec((E, H0), lambda i, u, m: (0, 0)),         # w1_movie
            pl.BlockSpec((1, H0), lambda i, u, m: (0, 0)),         # b1
            pl.BlockSpec((H0, H1), lambda i, u, m: (0, 0)),        # w2
            pl.BlockSpec((1, H1), lambda i, u, m: (0, 0)),         # b2
            pl.BlockSpec((1, H1), lambda i, u, m: (0, 0)),         # w3 row
            pl.BlockSpec(memory_space=pltpu.MemorySpace.SMEM),     # b3 scalar
        ],
        # one lane-dense (1, Bp) output slab; step i writes lane-block i
        out_specs=pl.BlockSpec((1, tb), lambda i, u, m: (0, i)),
        scratch_shapes=[
            pltpu.VMEM((tb, E), uemb.dtype),        # gathered user rows
            pltpu.VMEM((tb, E), memb.dtype),        # gathered movie rows
            pltpu.SemaphoreType.DMA((2, tb)),       # one sem per in-flight row copy
        ],
    )

    out = pl.pallas_call(
        ncf_kernel,
        out_shape=jax.ShapeDtypeStruct((1, Bp), jnp.float32),
        grid_spec=grid_spec,
        compiler_params=pltpu.CompilerParams(
            dimension_semantics=("parallel",)),
    )(uid, mid, uemb, memb, w1u, w1m, b1, w2, b2, w3, b3)

    # matches PyTorch `.squeeze()` for B > 1 (B == 1 would squeeze to a scalar there)
    return out.reshape(Bp)[:B]


def init_params(key, n_users, n_movies, embedding_dim=32, hidden_layers=(64, 32)):
    """Deterministic synthetic init matching the PyTorch module's shapes.
    Linear weights are stored transposed (in_features, out_features); the first
    layer's weight is stored split into its user / movie halves."""
    ks = jax.random.split(key, 9)
    e = embedding_dim
    h0, h1 = hidden_layers

    def unif(k, shape, fan_in):
        bound = 1.0 / jnp.sqrt(fan_in)
        return jax.random.uniform(k, shape, jnp.float32, -bound, bound)

    return {
        "user_emb": jax.random.normal(ks[0], (n_users, e), jnp.float32),
        "movie_emb": jax.random.normal(ks[1], (n_movies, e), jnp.float32),
        "w1_user": unif(ks[2], (e, h0), 2 * e),
        "w1_movie": unif(ks[3], (e, h0), 2 * e),
        "b1": unif(ks[4], (1, h0), 2 * e),
        "w2": unif(ks[5], (h0, h1), h0),
        "b2": unif(ks[6], (1, h1), h0),
        "w3": unif(ks[7], (1, h1), h1),        # final layer stored as a row
        "b3": unif(ks[8], (1, 1), h1),
    }


if __name__ == "__main__":
    key = jax.random.PRNGKey(0)
    k_params, k_u, k_m = jax.random.split(key, 3)

    n_users, n_movies = 64, 128
    embedding_dim = 32
    hidden_layers = (64, 32)
    batch = 8

    params = init_params(k_params, n_users, n_movies, embedding_dim, hidden_layers)
    user_id = jax.random.randint(k_u, (batch,), 0, n_users, dtype=jnp.int32)
    movie_id = jax.random.randint(k_m, (batch,), 0, n_movies, dtype=jnp.int32)

    preds = ncf_forward(user_id, movie_id, params)
    jax.block_until_ready(preds)

    # reference check in plain JAX (same math as the PyTorch module)
    ue = params["user_emb"][user_id]
    me = params["movie_emb"][movie_id]
    h = jnp.maximum(ue @ params["w1_user"] + me @ params["w1_movie"] + params["b1"], 0.0)
    h = jnp.maximum(h @ params["w2"] + params["b2"], 0.0)
    logit = jnp.sum(h * params["w3"], axis=-1) + params["b3"][0, 0]
    ref = 1.0 + 4.0 * jax.nn.sigmoid(logit)
    assert jnp.allclose(preds, ref, atol=1e-4), (preds, ref)

    print("KERNEL_OK")
</pallas_src>

<mosaic_0001>
module attributes {stable_mosaic.version = 11 : i64} {
  func.func @ncf_kernel(%arg0: i32, %arg1: memref<8xi32, #tpu.memory_space<smem>>, %arg2: memref<8xi32, #tpu.memory_space<smem>>, %arg3: memref<64x32xf32, #tpu.memory_space<any>>, %arg4: memref<128x32xf32, #tpu.memory_space<any>>, %arg5: memref<32x64xf32, #tpu.memory_space<vmem>>, %arg6: memref<32x64xf32, #tpu.memory_space<vmem>>, %arg7: memref<1x64xf32, #tpu.memory_space<vmem>>, %arg8: memref<64x32xf32, #tpu.memory_space<vmem>>, %arg9: memref<1x32xf32, #tpu.memory_space<vmem>>, %arg10: memref<1x32xf32, #tpu.memory_space<vmem>>, %arg11: memref<1x1xf32, #tpu.memory_space<smem>>, %arg12: memref<1x8xf32, #tpu.memory_space<vmem>>, %arg13: memref<8x32xf32, #tpu.memory_space<vmem>>, %arg14: memref<8x32xf32, #tpu.memory_space<vmem>>, %arg15: memref<2x8x!tpu.dma_semaphore, #tpu.memory_space<semaphore_mem>>) attributes {dimension_semantics = [#tpu.dimension_semantics<parallel>], iteration_bounds = array<i64: 1>, scalar_prefetch = 2 : i64, scratch_operands = 3 : i64, tpu.core_type = #tpu.core_type<tc>, window_params = [{}, {}, {pipeline_mode = #tpu.pipeline_mode<synchronous>, transform_indices = @transform_2, window_bounds = array<i64: 32, 64>}, {pipeline_mode = #tpu.pipeline_mode<synchronous>, transform_indices = @transform_3, window_bounds = array<i64: 32, 64>}, {pipeline_mode = #tpu.pipeline_mode<synchronous>, transform_indices = @transform_4, window_bounds = array<i64: 1, 64>}, {pipeline_mode = #tpu.pipeline_mode<synchronous>, transform_indices = @transform_5, window_bounds = array<i64: 64, 32>}, {pipeline_mode = #tpu.pipeline_mode<synchronous>, transform_indices = @transform_6, window_bounds = array<i64: 1, 32>}, {pipeline_mode = #tpu.pipeline_mode<synchronous>, transform_indices = @transform_7, window_bounds = array<i64: 1, 32>}, {transform_indices = @transform_8, window_bounds = array<i64: 1, 1>}, {transform_indices = @transform_9, window_bounds = array<i64: 1, 8>}]} {
    %c8_i32 = arith.constant 8 : i32
    %0 = arith.muli %arg0, %c8_i32 : i32
    %c0_i32 = arith.constant 0 : i32
    %1 = arith.addi %0, %c0_i32 : i32
    %2 = arith.index_cast %1 : i32 to index
    %3 = memref.load %arg1[%2] : memref<8xi32, #tpu.memory_space<smem>>
    %c0_i32_0 = arith.constant 0 : i32
    %4 = arith.addi %0, %c0_i32_0 : i32
    %5 = arith.index_cast %4 : i32 to index
    %6 = memref.load %arg2[%5] : memref<8xi32, #tpu.memory_space<smem>>
    %c0_i32_1 = arith.constant 0 : i32
    %c0_i32_2 = arith.constant 0 : i32
    %c0_i32_3 = arith.constant 0 : i32
    %7 = tpu.memref_slice %arg3[%3, %c0_i32_3] : memref<64x32xf32, #tpu.memory_space<any>> -> memref<1x32xf32, #tpu.memory_space<any>>
    %c0_i32_4 = arith.constant 0 : i32
    %c0_i32_5 = arith.constant 0 : i32
    %8 = tpu.memref_slice %arg13[%c0_i32_4, %c0_i32_5] : memref<8x32xf32, #tpu.memory_space<vmem>> -> memref<1x32xf32, #tpu.memory_space<vmem>>
    %9 = tpu.memref_slice %arg15[%c0_i32_1, %c0_i32_2] : memref<2x8x!tpu.dma_semaphore, #tpu.memory_space<semaphore_mem>> -> memref<1x1x!tpu.dma_semaphore, #tpu.memory_space<semaphore_mem>>
    %10 = tpu.memref_squeeze %9 : memref<1x1x!tpu.dma_semaphore, #tpu.memory_space<semaphore_mem>> -> memref<!tpu.dma_semaphore, #tpu.memory_space<semaphore_mem>>
    tpu.enqueue_dma source(%7 : memref<1x32xf32, #tpu.memory_space<any>>) target(%8 : memref<1x32xf32, #tpu.memory_space<vmem>>) target_semaphore(%10 : memref<!tpu.dma_semaphore, #tpu.memory_space<semaphore_mem>>)
    %c1_i32 = arith.constant 1 : i32
    %c0_i32_6 = arith.constant 0 : i32
    %c0_i32_7 = arith.constant 0 : i32
    %11 = tpu.memref_slice %arg4[%6, %c0_i32_7] : memref<128x32xf32, #tpu.memory_space<any>> -> memref<1x32xf32, #tpu.memory_space<any>>
    %c0_i32_8 = arith.constant 0 : i32
    %c0_i32_9 = arith.constant 0 : i32
    %12 = tpu.memref_slice %arg14[%c0_i32_8, %c0_i32_9] : memref<8x32xf32, #tpu.memory_space<vmem>> -> memref<1x32xf32, #tpu.memory_space<vmem>>
    %13 = tpu.memref_slice %arg15[%c1_i32, %c0_i32_6] : memref<2x8x!tpu.dma_semaphore, #tpu.memory_space<semaphore_mem>> -> memref<1x1x!tpu.dma_semaphore, #tpu.memory_space<semaphore_mem>>
    %14 = tpu.memref_squeeze %13 : memref<1x1x!tpu.dma_semaphore, #tpu.memory_space<semaphore_mem>> -> memref<!tpu.dma_semaphore, #tpu.memory_space<semaphore_mem>>
    tpu.enqueue_dma source(%11 : memref<1x32xf32, #tpu.memory_space<any>>) target(%12 : memref<1x32xf32, #tpu.memory_space<vmem>>) target_semaphore(%14 : memref<!tpu.dma_semaphore, #tpu.memory_space<semaphore_mem>>)
    %c1_i32_10 = arith.constant 1 : i32
    %15 = arith.addi %0, %c1_i32_10 : i32
    %16 = arith.index_cast %15 : i32 to index
    %17 = memref.load %arg1[%16] : memref<8xi32, #tpu.memory_space<smem>>
    %c1_i32_11 = arith.constant 1 : i32
    %18 = arith.addi %0, %c1_i32_11 : i32
    %19 = arith.index_cast %18 : i32 to index
    %20 = memref.load %arg2[%19] : memref<8xi32, #tpu.memory_space<smem>>
    %c0_i32_12 = arith.constant 0 : i32
    %c1_i32_13 = arith.constant 1 : i32
    %c0_i32_14 = arith.constant 0 : i32
    %21 = tpu.memref_slice %arg3[%17, %c0_i32_14] : memref<64x32xf32, #tpu.memory_space<any>> -> memref<1x32xf32, #tpu.memory_space<any>>
    %c1_i32_15 = arith.constant 1 : i32
    %c0_i32_16 = arith.constant 0 : i32
    %22 = tpu.memref_slice %arg13[%c1_i32_15, %c0_i32_16] : memref<8x32xf32, #tpu.memory_space<vmem>> -> memref<1x32xf32, #tpu.memory_space<vmem>>
    %23 = tpu.memref_slice %arg15[%c0_i32_12, %c1_i32_13] : memref<2x8x!tpu.dma_semaphore, #tpu.memory_space<semaphore_mem>> -> memref<1x1x!tpu.dma_semaphore, #tpu.memory_space<semaphore_mem>>
    %24 = tpu.memref_squeeze %23 : memref<1x1x!tpu.dma_semaphore, #tpu.memory_space<semaphore_mem>> -> memref<!tpu.dma_semaphore, #tpu.memory_space<semaphore_mem>>
    tpu.enqueue_dma source(%21 : memref<1x32xf32, #tpu.memory_space<any>>) target(%22 : memref<1x32xf32, #tpu.memory_space<vmem>>) target_semaphore(%24 : memref<!tpu.dma_semaphore, #tpu.memory_space<semaphore_mem>>)
    %c1_i32_17 = arith.constant 1 : i32
    %c1_i32_18 = arith.constant 1 : i32
    %c0_i32_19 = arith.constant 0 : i32
    %25 = tpu.memref_slice %arg4[%20, %c0_i32_19] : memref<128x32xf32, #tpu.memory_space<any>> -> memref<1x32xf32, #tpu.memory_space<any>>
    %c1_i32_20 = arith.constant 1 : i32
    %c0_i32_21 = arith.constant 0 : i32
    %26 = tpu.memref_slice %arg14[%c1_i32_20, %c0_i32_21] : memref<8x32xf32, #tpu.memory_space<vmem>> -> memref<1x32xf32, #tpu.memory_space<vmem>>
    %27 = tpu.memref_slice %arg15[%c1_i32_17, %c1_i32_18] : memref<2x8x!tpu.dma_semaphore, #tpu.memory_space<semaphore_mem>> -> memref<1x1x!tpu.dma_semaphore, #tpu.memory_space<semaphore_mem>>
    %28 = tpu.memref_squeeze %27 : memref<1x1x!tpu.dma_semaphore, #tpu.memory_space<semaphore_mem>> -> memref<!tpu.dma_semaphore, #tpu.memory_space<semaphore_mem>>
    tpu.enqueue_dma source(%25 : memref<1x32xf32, #tpu.memory_space<any>>) target(%26 : memref<1x32xf32, #tpu.memory_space<vmem>>) target_semaphore(%28 : memref<!tpu.dma_semaphore, #tpu.memory_space<semaphore_mem>>)
    %c2_i32 = arith.constant 2 : i32
    %29 = arith.addi %0, %c2_i32 : i32
    %30 = arith.index_cast %29 : i32 to index
    %31 = memref.load %arg1[%30] : memref<8xi32, #tpu.memory_space<smem>>
    %c2_i32_22 = arith.constant 2 : i32
    %32 = arith.addi %0, %c2_i32_22 : i32
    %33 = arith.index_cast %32 : i32 to index
    %34 = memref.load %arg2[%33] : memref<8xi32, #tpu.memory_space<smem>>
    %c0_i32_23 = arith.constant 0 : i32
    %c2_i32_24 = arith.constant 2 : i32
    %c0_i32_25 = arith.constant 0 : i32
    %35 = tpu.memref_slice %arg3[%31, %c0_i32_25] : memref<64x32xf32, #tpu.memory_space<any>> -> memref<1x32xf32, #tpu.memory_space<any>>
    %c2_i32_26 = arith.constant 2 : i32
    %c0_i32_27 = arith.constant 0 : i32
    %36 = tpu.memref_slice %arg13[%c2_i32_26, %c0_i32_27] : memref<8x32xf32, #tpu.memory_space<vmem>> -> memref<1x32xf32, #tpu.memory_space<vmem>>
    %37 = tpu.memref_slice %arg15[%c0_i32_23, %c2_i32_24] : memref<2x8x!tpu.dma_semaphore, #tpu.memory_space<semaphore_mem>> -> memref<1x1x!tpu.dma_semaphore, #tpu.memory_space<semaphore_mem>>
    %38 = tpu.memref_squeeze %37 : memref<1x1x!tpu.dma_semaphore, #tpu.memory_space<semaphore_mem>> -> memref<!tpu.dma_semaphore, #tpu.memory_space<semaphore_mem>>
    tpu.enqueue_dma source(%35 : memref<1x32xf32, #tpu.memory_space<any>>) target(%36 : memref<1x32xf32, #tpu.memory_space<vmem>>) target_semaphore(%38 : memref<!tpu.dma_semaphore, #tpu.memory_space<semaphore_mem>>)
    %c1_i32_28 = arith.constant 1 : i32
    %c2_i32_29 = arith.constant 2 : i32
    %c0_i32_30 = arith.constant 0 : i32
    %39 = tpu.memref_slice %arg4[%34, %c0_i32_30] : memref<128x32xf32, #tpu.memory_space<any>> -> memref<1x32xf32, #tpu.memory_space<any>>
    %c2_i32_31 = arith.constant 2 : i32
    %c0_i32_32 = arith.constant 0 : i32
    %40 = tpu.memref_slice %arg14[%c2_i32_31, %c0_i32_32] : memref<8x32xf32, #tpu.memory_space<vmem>> -> memref<1x32xf32, #tpu.memory_space<vmem>>
    %41 = tpu.memref_slice %arg15[%c1_i32_28, %c2_i32_29] : memref<2x8x!tpu.dma_semaphore, #tpu.memory_space<semaphore_mem>> -> memref<1x1x!tpu.dma_semaphore, #tpu.memory_space<semaphore_mem>>
    %42 = tpu.memref_squeeze %41 : memref<1x1x!tpu.dma_semaphore, #tpu.memory_space<semaphore_mem>> -> memref<!tpu.dma_semaphore, #tpu.memory_space<semaphore_mem>>
    tpu.enqueue_dma source(%39 : memref<1x32xf32, #tpu.memory_space<any>>) target(%40 : memref<1x32xf32, #tpu.memory_space<vmem>>) target_semaphore(%42 : memref<!tpu.dma_semaphore, #tpu.memory_space<semaphore_mem>>)
    %c3_i32 = arith.constant 3 : i32
    %43 = arith.addi %0, %c3_i32 : i32
    %44 = arith.index_cast %43 : i32 to index
    %45 = memref.load %arg1[%44] : memref<8xi32, #tpu.memory_space<smem>>
    %c3_i32_33 = arith.constant 3 : i32
    %46 = arith.addi %0, %c3_i32_33 : i32
    %47 = arith.index_cast %46 : i32 to index
    %48 = memref.load %arg2[%47] : memref<8xi32, #tpu.memory_space<smem>>
    %c0_i32_34 = arith.constant 0 : i32
    %c3_i32_35 = arith.constant 3 : i32
    %c0_i32_36 = arith.constant 0 : i32
    %49 = tpu.memref_slice %arg3[%45, %c0_i32_36] : memref<64x32xf32, #tpu.memory_space<any>> -> memref<1x32xf32, #tpu.memory_space<any>>
    %c3_i32_37 = arith.constant 3 : i32
    %c0_i32_38 = arith.constant 0 : i32
    %50 = tpu.memref_slice %arg13[%c3_i32_37, %c0_i32_38] : memref<8x32xf32, #tpu.memory_space<vmem>> -> memref<1x32xf32, #tpu.memory_space<vmem>>
    %51 = tpu.memref_slice %arg15[%c0_i32_34, %c3_i32_35] : memref<2x8x!tpu.dma_semaphore, #tpu.memory_space<semaphore_mem>> -> memref<1x1x!tpu.dma_semaphore, #tpu.memory_space<semaphore_mem>>
    %52 = tpu.memref_squeeze %51 : memref<1x1x!tpu.dma_semaphore, #tpu.memory_space<semaphore_mem>> -> memref<!tpu.dma_semaphore, #tpu.memory_space<semaphore_mem>>
    tpu.enqueue_dma source(%49 : memref<1x32xf32, #tpu.memory_space<any>>) target(%50 : memref<1x32xf32, #tpu.memory_space<vmem>>) target_semaphore(%52 : memref<!tpu.dma_semaphore, #tpu.memory_space<semaphore_mem>>)
    %c1_i32_39 = arith.constant 1 : i32
    %c3_i32_40 = arith.constant 3 : i32
    %c0_i32_41 = arith.constant 0 : i32
    %53 = tpu.memref_slice %arg4[%48, %c0_i32_41] : memref<128x32xf32, #tpu.memory_space<any>> -> memref<1x32xf32, #tpu.memory_space<any>>
    %c3_i32_42 = arith.constant 3 : i32
    %c0_i32_43 = arith.constant 0 : i32
    %54 = tpu.memref_slice %arg14[%c3_i32_42, %c0_i32_43] : memref<8x32xf32, #tpu.memory_space<vmem>> -> memref<1x32xf32, #tpu.memory_space<vmem>>
    %55 = tpu.memref_slice %arg15[%c1_i32_39, %c3_i32_40] : memref<2x8x!tpu.dma_semaphore, #tpu.memory_space<semaphore_mem>> -> memref<1x1x!tpu.dma_semaphore, #tpu.memory_space<semaphore_mem>>
    %56 = tpu.memref_squeeze %55 : memref<1x1x!tpu.dma_semaphore, #tpu.memory_space<semaphore_mem>> -> memref<!tpu.dma_semaphore, #tpu.memory_space<semaphore_mem>>
    tpu.enqueue_dma source(%53 : memref<1x32xf32, #tpu.memory_space<any>>) target(%54 : memref<1x32xf32, #tpu.memory_space<vmem>>) target_semaphore(%56 : memref<!tpu.dma_semaphore, #tpu.memory_space<semaphore_mem>>)
    %c4_i32 = arith.constant 4 : i32
    %57 = arith.addi %0, %c4_i32 : i32
    %58 = arith.index_cast %57 : i32 to index
    %59 = memref.load %arg1[%58] : memref<8xi32, #tpu.memory_space<smem>>
    %c4_i32_44 = arith.constant 4 : i32
    %60 = arith.addi %0, %c4_i32_44 : i32
    %61 = arith.index_cast %60 : i32 to index
    %62 = memref.load %arg2[%61] : memref<8xi32, #tpu.memory_space<smem>>
    %c0_i32_45 = arith.constant 0 : i32
    %c4_i32_46 = arith.constant 4 : i32
    %c0_i32_47 = arith.constant 0 : i32
    %63 = tpu.memref_slice %arg3[%59, %c0_i32_47] : memref<64x32xf32, #tpu.memory_space<any>> -> memref<1x32xf32, #tpu.memory_space<any>>
    %c4_i32_48 = arith.constant 4 : i32
    %c0_i32_49 = arith.constant 0 : i32
    %64 = tpu.memref_slice %arg13[%c4_i32_48, %c0_i32_49] : memref<8x32xf32, #tpu.memory_space<vmem>> -> memref<1x32xf32, #tpu.memory_space<vmem>>
    %65 = tpu.memref_slice %arg15[%c0_i32_45, %c4_i32_46] : memref<2x8x!tpu.dma_semaphore, #tpu.memory_space<semaphore_mem>> -> memref<1x1x!tpu.dma_semaphore, #tpu.memory_space<semaphore_mem>>
    %66 = tpu.memref_squeeze %65 : memref<1x1x!tpu.dma_semaphore, #tpu.memory_space<semaphore_mem>> -> memref<!tpu.dma_semaphore, #tpu.memory_space<semaphore_mem>>
    tpu.enqueue_dma source(%63 : memref<1x32xf32, #tpu.memory_space<any>>) target(%64 : memref<1x32xf32, #tpu.memory_space<vmem>>) target_semaphore(%66 : memref<!tpu.dma_semaphore, #tpu.memory_space<semaphore_mem>>)
    %c1_i32_50 = arith.constant 1 : i32
    %c4_i32_51 = arith.constant 4 : i32
    %c0_i32_52 = arith.constant 0 : i32
    %67 = tpu.memref_slice %arg4[%62, %c0_i32_52] : memref<128x32xf32, #tpu.memory_space<any>> -> memref<1x32xf32, #tpu.memory_space<any>>
    %c4_i32_53 = arith.constant 4 : i32
    %c0_i32_54 = arith.constant 0 : i32
    %68 = tpu.memref_slice %arg14[%c4_i32_53, %c0_i32_54] : memref<8x32xf32, #tpu.memory_space<vmem>> -> memref<1x32xf32, #tpu.memory_space<vmem>>
    %69 = tpu.memref_slice %arg15[%c1_i32_50, %c4_i32_51] : memref<2x8x!tpu.dma_semaphore, #tpu.memory_space<semaphore_mem>> -> memref<1x1x!tpu.dma_semaphore, #tpu.memory_space<semaphore_mem>>
    %70 = tpu.memref_squeeze %69 : memref<1x1x!tpu.dma_semaphore, #tpu.memory_space<semaphore_mem>> -> memref<!tpu.dma_semaphore, #tpu.memory_space<semaphore_mem>>
    tpu.enqueue_dma source(%67 : memref<1x32xf32, #tpu.memory_space<any>>) target(%68 : memref<1x32xf32, #tpu.memory_space<vmem>>) target_semaphore(%70 : memref<!tpu.dma_semaphore, #tpu.memory_space<semaphore_mem>>)
    %c5_i32 = arith.constant 5 : i32
    %71 = arith.addi %0, %c5_i32 : i32
    %72 = arith.index_cast %71 : i32 to index
    %73 = memref.load %arg1[%72] : memref<8xi32, #tpu.memory_space<smem>>
    %c5_i32_55 = arith.constant 5 : i32
    %74 = arith.addi %0, %c5_i32_55 : i32
    %75 = arith.index_cast %74 : i32 to index
    %76 = memref.load %arg2[%75] : memref<8xi32, #tpu.memory_space<smem>>
    %c0_i32_56 = arith.constant 0 : i32
    %c5_i32_57 = arith.constant 5 : i32
    %c0_i32_58 = arith.constant 0 : i32
    %77 = tpu.memref_slice %arg3[%73, %c0_i32_58] : memref<64x32xf32, #tpu.memory_space<any>> -> memref<1x32xf32, #tpu.memory_space<any>>
    %c5_i32_59 = arith.constant 5 : i32
    %c0_i32_60 = arith.constant 0 : i32
    %78 = tpu.memref_slice %arg13[%c5_i32_59, %c0_i32_60] : memref<8x32xf32, #tpu.memory_space<vmem>> -> memref<1x32xf32, #tpu.memory_space<vmem>>
    %79 = tpu.memref_slice %arg15[%c0_i32_56, %c5_i32_57] : memref<2x8x!tpu.dma_semaphore, #tpu.memory_space<semaphore_mem>> -> memref<1x1x!tpu.dma_semaphore, #tpu.memory_space<semaphore_mem>>
    %80 = tpu.memref_squeeze %79 : memref<1x1x!tpu.dma_semaphore, #tpu.memory_space<semaphore_mem>> -> memref<!tpu.dma_semaphore, #tpu.memory_space<semaphore_mem>>
    tpu.enqueue_dma source(%77 : memref<1x32xf32, #tpu.memory_space<any>>) target(%78 : memref<1x32xf32, #tpu.memory_space<vmem>>) target_semaphore(%80 : memref<!tpu.dma_semaphore, #tpu.memory_space<semaphore_mem>>)
    %c1_i32_61 = arith.constant 1 : i32
    %c5_i32_62 = arith.constant 5 : i32
    %c0_i32_63 = arith.constant 0 : i32
    %81 = tpu.memref_slice %arg4[%76, %c0_i32_63] : memref<128x32xf32, #tpu.memory_space<any>> -> memref<1x32xf32, #tpu.memory_space<any>>
    %c5_i32_64 = arith.constant 5 : i32
    %c0_i32_65 = arith.constant 0 : i32
    %82 = tpu.memref_slice %arg14[%c5_i32_64, %c0_i32_65] : memref<8x32xf32, #tpu.memory_space<vmem>> -> memref<1x32xf32, #tpu.memory_space<vmem>>
    %83 = tpu.memref_slice %arg15[%c1_i32_61, %c5_i32_62] : memref<2x8x!tpu.dma_semaphore, #tpu.memory_space<semaphore_mem>> -> memref<1x1x!tpu.dma_semaphore, #tpu.memory_space<semaphore_mem>>
    %84 = tpu.memref_squeeze %83 : memref<1x1x!tpu.dma_semaphore, #tpu.memory_space<semaphore_mem>> -> memref<!tpu.dma_semaphore, #tpu.memory_space<semaphore_mem>>
    tpu.enqueue_dma source(%81 : memref<1x32xf32, #tpu.memory_space<any>>) target(%82 : memref<1x32xf32, #tpu.memory_space<vmem>>) target_semaphore(%84 : memref<!tpu.dma_semaphore, #tpu.memory_space<semaphore_mem>>)
    %c6_i32 = arith.constant 6 : i32
    %85 = arith.addi %0, %c6_i32 : i32
    %86 = arith.index_cast %85 : i32 to index
    %87 = memref.load %arg1[%86] : memref<8xi32, #tpu.memory_space<smem>>
    %c6_i32_66 = arith.constant 6 : i32
    %88 = arith.addi %0, %c6_i32_66 : i32
    %89 = arith.index_cast %88 : i32 to index
    %90 = memref.load %arg2[%89] : memref<8xi32, #tpu.memory_space<smem>>
    %c0_i32_67 = arith.constant 0 : i32
    %c6_i32_68 = arith.constant 6 : i32
    %c0_i32_69 = arith.constant 0 : i32
    %91 = tpu.memref_slice %arg3[%87, %c0_i32_69] : memref<64x32xf32, #tpu.memory_space<any>> -> memref<1x32xf32, #tpu.memory_space<any>>
    %c6_i32_70 = arith.constant 6 : i32
    %c0_i32_71 = arith.constant 0 : i32
    %92 = tpu.memref_slice %arg13[%c6_i32_70, %c0_i32_71] : memref<8x32xf32, #tpu.memory_space<vmem>> -> memref<1x32xf32, #tpu.memory_space<vmem>>
    %93 = tpu.memref_slice %arg15[%c0_i32_67, %c6_i32_68] : memref<2x8x!tpu.dma_semaphore, #tpu.memory_space<semaphore_mem>> -> memref<1x1x!tpu.dma_semaphore, #tpu.memory_space<semaphore_mem>>
    %94 = tpu.memref_squeeze %93 : memref<1x1x!tpu.dma_semaphore, #tpu.memory_space<semaphore_mem>> -> memref<!tpu.dma_semaphore, #tpu.memory_space<semaphore_mem>>
    tpu.enqueue_dma source(%91 : memref<1x32xf32, #tpu.memory_space<any>>) target(%92 : memref<1x32xf32, #tpu.memory_space<vmem>>) target_semaphore(%94 : memref<!tpu.dma_semaphore, #tpu.memory_space<semaphore_mem>>)
    %c1_i32_72 = arith.constant 1 : i32
    %c6_i32_73 = arith.constant 6 : i32
    %c0_i32_74 = arith.constant 0 : i32
    %95 = tpu.memref_slice %arg4[%90, %c0_i32_74] : memref<128x32xf32, #tpu.memory_space<any>> -> memref<1x32xf32, #tpu.memory_space<any>>
    %c6_i32_75 = arith.constant 6 : i32
    %c0_i32_76 = arith.constant 0 : i32
    %96 = tpu.memref_slice %arg14[%c6_i32_75, %c0_i32_76] : memref<8x32xf32, #tpu.memory_space<vmem>> -> memref<1x32xf32, #tpu.memory_space<vmem>>
    %97 = tpu.memref_slice %arg15[%c1_i32_72, %c6_i32_73] : memref<2x8x!tpu.dma_semaphore, #tpu.memory_space<semaphore_mem>> -> memref<1x1x!tpu.dma_semaphore, #tpu.memory_space<semaphore_mem>>
    %98 = tpu.memref_squeeze %97 : memref<1x1x!tpu.dma_semaphore, #tpu.memory_space<semaphore_mem>> -> memref<!tpu.dma_semaphore, #tpu.memory_space<semaphore_mem>>
    tpu.enqueue_dma source(%95 : memref<1x32xf32, #tpu.memory_space<any>>) target(%96 : memref<1x32xf32, #tpu.memory_space<vmem>>) target_semaphore(%98 : memref<!tpu.dma_semaphore, #tpu.memory_space<semaphore_mem>>)
    %c7_i32 = arith.constant 7 : i32
    %99 = arith.addi %0, %c7_i32 : i32
    %100 = arith.index_cast %99 : i32 to index
    %101 = memref.load %arg1[%100] : memref<8xi32, #tpu.memory_space<smem>>
    %c7_i32_77 = arith.constant 7 : i32
    %102 = arith.addi %0, %c7_i32_77 : i32
    %103 = arith.index_cast %102 : i32 to index
    %104 = memref.load %arg2[%103] : memref<8xi32, #tpu.memory_space<smem>>
    %c0_i32_78 = arith.constant 0 : i32
    %c7_i32_79 = arith.constant 7 : i32
    %c0_i32_80 = arith.constant 0 : i32
    %105 = tpu.memref_slice %arg3[%101, %c0_i32_80] : memref<64x32xf32, #tpu.memory_space<any>> -> memref<1x32xf32, #tpu.memory_space<any>>
    %c7_i32_81 = arith.constant 7 : i32
    %c0_i32_82 = arith.constant 0 : i32
    %106 = tpu.memref_slice %arg13[%c7_i32_81, %c0_i32_82] : memref<8x32xf32, #tpu.memory_space<vmem>> -> memref<1x32xf32, #tpu.memory_space<vmem>>
    %107 = tpu.memref_slice %arg15[%c0_i32_78, %c7_i32_79] : memref<2x8x!tpu.dma_semaphore, #tpu.memory_space<semaphore_mem>> -> memref<1x1x!tpu.dma_semaphore, #tpu.memory_space<semaphore_mem>>
    %108 = tpu.memref_squeeze %107 : memref<1x1x!tpu.dma_semaphore, #tpu.memory_space<semaphore_mem>> -> memref<!tpu.dma_semaphore, #tpu.memory_space<semaphore_mem>>
    tpu.enqueue_dma source(%105 : memref<1x32xf32, #tpu.memory_space<any>>) target(%106 : memref<1x32xf32, #tpu.memory_space<vmem>>) target_semaphore(%108 : memref<!tpu.dma_semaphore, #tpu.memory_space<semaphore_mem>>)
    %c1_i32_83 = arith.constant 1 : i32
    %c7_i32_84 = arith.constant 7 : i32
    %c0_i32_85 = arith.constant 0 : i32
    %109 = tpu.memref_slice %arg4[%104, %c0_i32_85] : memref<128x32xf32, #tpu.memory_space<any>> -> memref<1x32xf32, #tpu.memory_space<any>>
    %c7_i32_86 = arith.constant 7 : i32
    %c0_i32_87 = arith.constant 0 : i32
    %110 = tpu.memref_slice %arg14[%c7_i32_86, %c0_i32_87] : memref<8x32xf32, #tpu.memory_space<vmem>> -> memref<1x32xf32, #tpu.memory_space<vmem>>
    %111 = tpu.memref_slice %arg15[%c1_i32_83, %c7_i32_84] : memref<2x8x!tpu.dma_semaphore, #tpu.memory_space<semaphore_mem>> -> memref<1x1x!tpu.dma_semaphore, #tpu.memory_space<semaphore_mem>>
    %112 = tpu.memref_squeeze %111 : memref<1x1x!tpu.dma_semaphore, #tpu.memory_space<semaphore_mem>> -> memref<!tpu.dma_semaphore, #tpu.memory_space<semaphore_mem>>
    tpu.enqueue_dma source(%109 : memref<1x32xf32, #tpu.memory_space<any>>) target(%110 : memref<1x32xf32, #tpu.memory_space<vmem>>) target_semaphore(%112 : memref<!tpu.dma_semaphore, #tpu.memory_space<semaphore_mem>>)
    %c0_i32_88 = arith.constant 0 : i32
    %c0_i32_89 = arith.constant 0 : i32
    %c0_i32_90 = arith.constant 0 : i32
    %113 = tpu.memref_slice %arg3[%3, %c0_i32_90] : memref<64x32xf32, #tpu.memory_space<any>> -> memref<1x32xf32, #tpu.memory_space<any>>
    %c0_i32_91 = arith.constant 0 : i32
    %c0_i32_92 = arith.constant 0 : i32
    %114 = tpu.memref_slice %arg13[%c0_i32_91, %c0_i32_92] : memref<8x32xf32, #tpu.memory_space<vmem>> -> memref<1x32xf32, #tpu.memory_space<vmem>>
    %115 = tpu.memref_slice %arg15[%c0_i32_88, %c0_i32_89] : memref<2x8x!tpu.dma_semaphore, #tpu.memory_space<semaphore_mem>> -> memref<1x1x!tpu.dma_semaphore, #tpu.memory_space<semaphore_mem>>
    %116 = tpu.memref_squeeze %115 : memref<1x1x!tpu.dma_semaphore, #tpu.memory_space<semaphore_mem>> -> memref<!tpu.dma_semaphore, #tpu.memory_space<semaphore_mem>>
    tpu.wait_dma2 semaphore(%116 : memref<!tpu.dma_semaphore, #tpu.memory_space<semaphore_mem>>) src(%113 : memref<1x32xf32, #tpu.memory_space<any>>) dst(%114 : memref<1x32xf32, #tpu.memory_space<vmem>>)
    %c1_i32_93 = arith.constant 1 : i32
    %c0_i32_94 = arith.constant 0 : i32
    %c0_i32_95 = arith.constant 0 : i32
    %117 = tpu.memref_slice %arg4[%6, %c0_i32_95] : memref<128x32xf32, #tpu.memory_space<any>> -> memref<1x32xf32, #tpu.memory_space<any>>
    %c0_i32_96 = arith.constant 0 : i32
    %c0_i32_97 = arith.constant 0 : i32
    %118 = tpu.memref_slice %arg14[%c0_i32_96, %c0_i32_97] : memref<8x32xf32, #tpu.memory_space<vmem>> -> memref<1x32xf32, #tpu.memory_space<vmem>>
    %119 = tpu.memref_slice %arg15[%c1_i32_93, %c0_i32_94] : memref<2x8x!tpu.dma_semaphore, #tpu.memory_space<semaphore_mem>> -> memref<1x1x!tpu.dma_semaphore, #tpu.memory_space<semaphore_mem>>
    %120 = tpu.memref_squeeze %119 : memref<1x1x!tpu.dma_semaphore, #tpu.memory_space<semaphore_mem>> -> memref<!tpu.dma_semaphore, #tpu.memory_space<semaphore_mem>>
    tpu.wait_dma2 semaphore(%120 : memref<!tpu.dma_semaphore, #tpu.memory_space<semaphore_mem>>) src(%117 : memref<1x32xf32, #tpu.memory_space<any>>) dst(%118 : memref<1x32xf32, #tpu.memory_space<vmem>>)
    %c0_i32_98 = arith.constant 0 : i32
    %c1_i32_99 = arith.constant 1 : i32
    %c0_i32_100 = arith.constant 0 : i32
    %121 = tpu.memref_slice %arg3[%17, %c0_i32_100] : memref<64x32xf32, #tpu.memory_space<any>> -> memref<1x32xf32, #tpu.memory_space<any>>
    %c1_i32_101 = arith.constant 1 : i32
    %c0_i32_102 = arith.constant 0 : i32
    %122 = tpu.memref_slice %arg13[%c1_i32_101, %c0_i32_102] : memref<8x32xf32, #tpu.memory_space<vmem>> -> memref<1x32xf32, #tpu.memory_space<vmem>>
    %123 = tpu.memref_slice %arg15[%c0_i32_98, %c1_i32_99] : memref<2x8x!tpu.dma_semaphore, #tpu.memory_space<semaphore_mem>> -> memref<1x1x!tpu.dma_semaphore, #tpu.memory_space<semaphore_mem>>
    %124 = tpu.memref_squeeze %123 : memref<1x1x!tpu.dma_semaphore, #tpu.memory_space<semaphore_mem>> -> memref<!tpu.dma_semaphore, #tpu.memory_space<semaphore_mem>>
    tpu.wait_dma2 semaphore(%124 : memref<!tpu.dma_semaphore, #tpu.memory_space<semaphore_mem>>) src(%121 : memref<1x32xf32, #tpu.memory_space<any>>) dst(%122 : memref<1x32xf32, #tpu.memory_space<vmem>>)
    %c1_i32_103 = arith.constant 1 : i32
    %c1_i32_104 = arith.constant 1 : i32
    %c0_i32_105 = arith.constant 0 : i32
    %125 = tpu.memref_slice %arg4[%20, %c0_i32_105] : memref<128x32xf32, #tpu.memory_space<any>> -> memref<1x32xf32, #tpu.memory_space<any>>
    %c1_i32_106 = arith.constant 1 : i32
    %c0_i32_107 = arith.constant 0 : i32
    %126 = tpu.memref_slice %arg14[%c1_i32_106, %c0_i32_107] : memref<8x32xf32, #tpu.memory_space<vmem>> -> memref<1x32xf32, #tpu.memory_space<vmem>>
    %127 = tpu.memref_slice %arg15[%c1_i32_103, %c1_i32_104] : memref<2x8x!tpu.dma_semaphore, #tpu.memory_space<semaphore_mem>> -> memref<1x1x!tpu.dma_semaphore, #tpu.memory_space<semaphore_mem>>
    %128 = tpu.memref_squeeze %127 : memref<1x1x!tpu.dma_semaphore, #tpu.memory_space<semaphore_mem>> -> memref<!tpu.dma_semaphore, #tpu.memory_space<semaphore_mem>>
    tpu.wait_dma2 semaphore(%128 : memref<!tpu.dma_semaphore, #tpu.memory_space<semaphore_mem>>) src(%125 : memref<1x32xf32, #tpu.memory_space<any>>) dst(%126 : memref<1x32xf32, #tpu.memory_space<vmem>>)
    %c0_i32_108 = arith.constant 0 : i32
    %c2_i32_109 = arith.constant 2 : i32
    %c0_i32_110 = arith.constant 0 : i32
    %129 = tpu.memref_slice %arg3[%31, %c0_i32_110] : memref<64x32xf32, #tpu.memory_space<any>> -> memref<1x32xf32, #tpu.memory_space<any>>
    %c2_i32_111 = arith.constant 2 : i32
    %c0_i32_112 = arith.constant 0 : i32
    %130 = tpu.memref_slice %arg13[%c2_i32_111, %c0_i32_112] : memref<8x32xf32, #tpu.memory_space<vmem>> -> memref<1x32xf32, #tpu.memory_space<vmem>>
    %131 = tpu.memref_slice %arg15[%c0_i32_108, %c2_i32_109] : memref<2x8x!tpu.dma_semaphore, #tpu.memory_space<semaphore_mem>> -> memref<1x1x!tpu.dma_semaphore, #tpu.memory_space<semaphore_mem>>
    %132 = tpu.memref_squeeze %131 : memref<1x1x!tpu.dma_semaphore, #tpu.memory_space<semaphore_mem>> -> memref<!tpu.dma_semaphore, #tpu.memory_space<semaphore_mem>>
    tpu.wait_dma2 semaphore(%132 : memref<!tpu.dma_semaphore, #tpu.memory_space<semaphore_mem>>) src(%129 : memref<1x32xf32, #tpu.memory_space<any>>) dst(%130 : memref<1x32xf32, #tpu.memory_space<vmem>>)
    %c1_i32_113 = arith.constant 1 : i32
    %c2_i32_114 = arith.constant 2 : i32
    %c0_i32_115 = arith.constant 0 : i32
    %133 = tpu.memref_slice %arg4[%34, %c0_i32_115] : memref<128x32xf32, #tpu.memory_space<any>> -> memref<1x32xf32, #tpu.memory_space<any>>
    %c2_i32_116 = arith.constant 2 : i32
    %c0_i32_117 = arith.constant 0 : i32
    %134 = tpu.memref_slice %arg14[%c2_i32_116, %c0_i32_117] : memref<8x32xf32, #tpu.memory_space<vmem>> -> memref<1x32xf32, #tpu.memory_space<vmem>>
    %135 = tpu.memref_slice %arg15[%c1_i32_113, %c2_i32_114] : memref<2x8x!tpu.dma_semaphore, #tpu.memory_space<semaphore_mem>> -> memref<1x1x!tpu.dma_semaphore, #tpu.memory_space<semaphore_mem>>
    %136 = tpu.memref_squeeze %135 : memref<1x1x!tpu.dma_semaphore, #tpu.memory_space<semaphore_mem>> -> memref<!tpu.dma_semaphore, #tpu.memory_space<semaphore_mem>>
    tpu.wait_dma2 semaphore(%136 : memref<!tpu.dma_semaphore, #tpu.memory_space<semaphore_mem>>) src(%133 : memref<1x32xf32, #tpu.memory_space<any>>) dst(%134 : memref<1x32xf32, #tpu.memory_space<vmem>>)
    %c0_i32_118 = arith.constant 0 : i32
    %c3_i32_119 = arith.constant 3 : i32
    %c0_i32_120 = arith.constant 0 : i32
    %137 = tpu.memref_slice %arg3[%45, %c0_i32_120] : memref<64x32xf32, #tpu.memory_space<any>> -> memref<1x32xf32, #tpu.memory_space<any>>
    %c3_i32_121 = arith.constant 3 : i32
    %c0_i32_122 = arith.constant 0 : i32
    %138 = tpu.memref_slice %arg13[%c3_i32_121, %c0_i32_122] : memref<8x32xf32, #tpu.memory_space<vmem>> -> memref<1x32xf32, #tpu.memory_space<vmem>>
    %139 = tpu.memref_slice %arg15[%c0_i32_118, %c3_i32_119] : memref<2x8x!tpu.dma_semaphore, #tpu.memory_space<semaphore_mem>> -> memref<1x1x!tpu.dma_semaphore, #tpu.memory_space<semaphore_mem>>
    %140 = tpu.memref_squeeze %139 : memref<1x1x!tpu.dma_semaphore, #tpu.memory_space<semaphore_mem>> -> memref<!tpu.dma_semaphore, #tpu.memory_space<semaphore_mem>>
    tpu.wait_dma2 semaphore(%140 : memref<!tpu.dma_semaphore, #tpu.memory_space<semaphore_mem>>) src(%137 : memref<1x32xf32, #tpu.memory_space<any>>) dst(%138 : memref<1x32xf32, #tpu.memory_space<vmem>>)
    %c1_i32_123 = arith.constant 1 : i32
    %c3_i32_124 = arith.constant 3 : i32
    %c0_i32_125 = arith.constant 0 : i32
    %141 = tpu.memref_slice %arg4[%48, %c0_i32_125] : memref<128x32xf32, #tpu.memory_space<any>> -> memref<1x32xf32, #tpu.memory_space<any>>
    %c3_i32_126 = arith.constant 3 : i32
    %c0_i32_127 = arith.constant 0 : i32
    %142 = tpu.memref_slice %arg14[%c3_i32_126, %c0_i32_127] : memref<8x32xf32, #tpu.memory_space<vmem>> -> memref<1x32xf32, #tpu.memory_space<vmem>>
    %143 = tpu.memref_slice %arg15[%c1_i32_123, %c3_i32_124] : memref<2x8x!tpu.dma_semaphore, #tpu.memory_space<semaphore_mem>> -> memref<1x1x!tpu.dma_semaphore, #tpu.memory_space<semaphore_mem>>
    %144 = tpu.memref_squeeze %143 : memref<1x1x!tpu.dma_semaphore, #tpu.memory_space<semaphore_mem>> -> memref<!tpu.dma_semaphore, #tpu.memory_space<semaphore_mem>>
    tpu.wait_dma2 semaphore(%144 : memref<!tpu.dma_semaphore, #tpu.memory_space<semaphore_mem>>) src(%141 : memref<1x32xf32, #tpu.memory_space<any>>) dst(%142 : memref<1x32xf32, #tpu.memory_space<vmem>>)
    %c0_i32_128 = arith.constant 0 : i32
    %c4_i32_129 = arith.constant 4 : i32
    %c0_i32_130 = arith.constant 0 : i32
    %145 = tpu.memref_slice %arg3[%59, %c0_i32_130] : memref<64x32xf32, #tpu.memory_space<any>> -> memref<1x32xf32, #tpu.memory_space<any>>
    %c4_i32_131 = arith.constant 4 : i32
    %c0_i32_132 = arith.constant 0 : i32
    %146 = tpu.memref_slice %arg13[%c4_i32_131, %c0_i32_132] : memref<8x32xf32, #tpu.memory_space<vmem>> -> memref<1x32xf32, #tpu.memory_space<vmem>>
    %147 = tpu.memref_slice %arg15[%c0_i32_128, %c4_i32_129] : memref<2x8x!tpu.dma_semaphore, #tpu.memory_space<semaphore_mem>> -> memref<1x1x!tpu.dma_semaphore, #tpu.memory_space<semaphore_mem>>
    %148 = tpu.memref_squeeze %147 : memref<1x1x!tpu.dma_semaphore, #tpu.memory_space<semaphore_mem>> -> memref<!tpu.dma_semaphore, #tpu.memory_space<semaphore_mem>>
    tpu.wait_dma2 semaphore(%148 : memref<!tpu.dma_semaphore, #tpu.memory_space<semaphore_mem>>) src(%145 : memref<1x32xf32, #tpu.memory_space<any>>) dst(%146 : memref<1x32xf32, #tpu.memory_space<vmem>>)
    %c1_i32_133 = arith.constant 1 : i32
    %c4_i32_134 = arith.constant 4 : i32
    %c0_i32_135 = arith.constant 0 : i32
    %149 = tpu.memref_slice %arg4[%62, %c0_i32_135] : memref<128x32xf32, #tpu.memory_space<any>> -> memref<1x32xf32, #tpu.memory_space<any>>
    %c4_i32_136 = arith.constant 4 : i32
    %c0_i32_137 = arith.constant 0 : i32
    %150 = tpu.memref_slice %arg14[%c4_i32_136, %c0_i32_137] : memref<8x32xf32, #tpu.memory_space<vmem>> -> memref<1x32xf32, #tpu.memory_space<vmem>>
    %151 = tpu.memref_slice %arg15[%c1_i32_133, %c4_i32_134] : memref<2x8x!tpu.dma_semaphore, #tpu.memory_space<semaphore_mem>> -> memref<1x1x!tpu.dma_semaphore, #tpu.memory_space<semaphore_mem>>
    %152 = tpu.memref_squeeze %151 : memref<1x1x!tpu.dma_semaphore, #tpu.memory_space<semaphore_mem>> -> memref<!tpu.dma_semaphore, #tpu.memory_space<semaphore_mem>>
    tpu.wait_dma2 semaphore(%152 : memref<!tpu.dma_semaphore, #tpu.memory_space<semaphore_mem>>) src(%149 : memref<1x32xf32, #tpu.memory_space<any>>) dst(%150 : memref<1x32xf32, #tpu.memory_space<vmem>>)
    %c0_i32_138 = arith.constant 0 : i32
    %c5_i32_139 = arith.constant 5 : i32
    %c0_i32_140 = arith.constant 0 : i32
    %153 = tpu.memref_slice %arg3[%73, %c0_i32_140] : memref<64x32xf32, #tpu.memory_space<any>> -> memref<1x32xf32, #tpu.memory_space<any>>
    %c5_i32_141 = arith.constant 5 : i32
    %c0_i32_142 = arith.constant 0 : i32
    %154 = tpu.memref_slice %arg13[%c5_i32_141, %c0_i32_142] : memref<8x32xf32, #tpu.memory_space<vmem>> -> memref<1x32xf32, #tpu.memory_space<vmem>>
    %155 = tpu.memref_slice %arg15[%c0_i32_138, %c5_i32_139] : memref<2x8x!tpu.dma_semaphore, #tpu.memory_space<semaphore_mem>> -> memref<1x1x!tpu.dma_semaphore, #tpu.memory_space<semaphore_mem>>
    %156 = tpu.memref_squeeze %155 : memref<1x1x!tpu.dma_semaphore, #tpu.memory_space<semaphore_mem>> -> memref<!tpu.dma_semaphore, #tpu.memory_space<semaphore_mem>>
    tpu.wait_dma2 semaphore(%156 : memref<!tpu.dma_semaphore, #tpu.memory_space<semaphore_mem>>) src(%153 : memref<1x32xf32, #tpu.memory_space<any>>) dst(%154 : memref<1x32xf32, #tpu.memory_space<vmem>>)
    %c1_i32_143 = arith.constant 1 : i32
    %c5_i32_144 = arith.constant 5 : i32
    %c0_i32_145 = arith.constant 0 : i32
    %157 = tpu.memref_slice %arg4[%76, %c0_i32_145] : memref<128x32xf32, #tpu.memory_space<any>> -> memref<1x32xf32, #tpu.memory_space<any>>
    %c5_i32_146 = arith.constant 5 : i32
    %c0_i32_147 = arith.constant 0 : i32
    %158 = tpu.memref_slice %arg14[%c5_i32_146, %c0_i32_147] : memref<8x32xf32, #tpu.memory_space<vmem>> -> memref<1x32xf32, #tpu.memory_space<vmem>>
    %159 = tpu.memref_slice %arg15[%c1_i32_143, %c5_i32_144] : memref<2x8x!tpu.dma_semaphore, #tpu.memory_space<semaphore_mem>> -> memref<1x1x!tpu.dma_semaphore, #tpu.memory_space<semaphore_mem>>
    %160 = tpu.memref_squeeze %159 : memref<1x1x!tpu.dma_semaphore, #tpu.memory_space<semaphore_mem>> -> memref<!tpu.dma_semaphore, #tpu.memory_space<semaphore_mem>>
    tpu.wait_dma2 semaphore(%160 : memref<!tpu.dma_semaphore, #tpu.memory_space<semaphore_mem>>) src(%157 : memref<1x32xf32, #tpu.memory_space<any>>) dst(%158 : memref<1x32xf32, #tpu.memory_space<vmem>>)
    %c0_i32_148 = arith.constant 0 : i32
    %c6_i32_149 = arith.constant 6 : i32
    %c0_i32_150 = arith.constant 0 : i32
    %161 = tpu.memref_slice %arg3[%87, %c0_i32_150] : memref<64x32xf32, #tpu.memory_space<any>> -> memref<1x32xf32, #tpu.memory_space<any>>
    %c6_i32_151 = arith.constant 6 : i32
    %c0_i32_152 = arith.constant 0 : i32
    %162 = tpu.memref_slice %arg13[%c6_i32_151, %c0_i32_152] : memref<8x32xf32, #tpu.memory_space<vmem>> -> memref<1x32xf32, #tpu.memory_space<vmem>>
    %163 = tpu.memref_slice %arg15[%c0_i32_148, %c6_i32_149] : memref<2x8x!tpu.dma_semaphore, #tpu.memory_space<semaphore_mem>> -> memref<1x1x!tpu.dma_semaphore, #tpu.memory_space<semaphore_mem>>
    %164 = tpu.memref_squeeze %163 : memref<1x1x!tpu.dma_semaphore, #tpu.memory_space<semaphore_mem>> -> memref<!tpu.dma_semaphore, #tpu.memory_space<semaphore_mem>>
    tpu.wait_dma2 semaphore(%164 : memref<!tpu.dma_semaphore, #tpu.memory_space<semaphore_mem>>) src(%161 : memref<1x32xf32, #tpu.memory_space<any>>) dst(%162 : memref<1x32xf32, #tpu.memory_space<vmem>>)
    %c1_i32_153 = arith.constant 1 : i32
    %c6_i32_154 = arith.constant 6 : i32
    %c0_i32_155 = arith.constant 0 : i32
    %165 = tpu.memref_slice %arg4[%90, %c0_i32_155] : memref<128x32xf32, #tpu.memory_space<any>> -> memref<1x32xf32, #tpu.memory_space<any>>
    %c6_i32_156 = arith.constant 6 : i32
    %c0_i32_157 = arith.constant 0 : i32
    %166 = tpu.memref_slice %arg14[%c6_i32_156, %c0_i32_157] : memref<8x32xf32, #tpu.memory_space<vmem>> -> memref<1x32xf32, #tpu.memory_space<vmem>>
    %167 = tpu.memref_slice %arg15[%c1_i32_153, %c6_i32_154] : memref<2x8x!tpu.dma_semaphore, #tpu.memory_space<semaphore_mem>> -> memref<1x1x!tpu.dma_semaphore, #tpu.memory_space<semaphore_mem>>
    %168 = tpu.memref_squeeze %167 : memref<1x1x!tpu.dma_semaphore, #tpu.memory_space<semaphore_mem>> -> memref<!tpu.dma_semaphore, #tpu.memory_space<semaphore_mem>>
    tpu.wait_dma2 semaphore(%168 : memref<!tpu.dma_semaphore, #tpu.memory_space<semaphore_mem>>) src(%165 : memref<1x32xf32, #tpu.memory_space<any>>) dst(%166 : memref<1x32xf32, #tpu.memory_space<vmem>>)
    %c0_i32_158 = arith.constant 0 : i32
    %c7_i32_159 = arith.constant 7 : i32
    %c0_i32_160 = arith.constant 0 : i32
    %169 = tpu.memref_slice %arg3[%101, %c0_i32_160] : memref<64x32xf32, #tpu.memory_space<any>> -> memref<1x32xf32, #tpu.memory_space<any>>
    %c7_i32_161 = arith.constant 7 : i32
    %c0_i32_162 = arith.constant 0 : i32
    %170 = tpu.memref_slice %arg13[%c7_i32_161, %c0_i32_162] : memref<8x32xf32, #tpu.memory_space<vmem>> -> memref<1x32xf32, #tpu.memory_space<vmem>>
    %171 = tpu.memref_slice %arg15[%c0_i32_158, %c7_i32_159] : memref<2x8x!tpu.dma_semaphore, #tpu.memory_space<semaphore_mem>> -> memref<1x1x!tpu.dma_semaphore, #tpu.memory_space<semaphore_mem>>
    %172 = tpu.memref_squeeze %171 : memref<1x1x!tpu.dma_semaphore, #tpu.memory_space<semaphore_mem>> -> memref<!tpu.dma_semaphore, #tpu.memory_space<semaphore_mem>>
    tpu.wait_dma2 semaphore(%172 : memref<!tpu.dma_semaphore, #tpu.memory_space<semaphore_mem>>) src(%169 : memref<1x32xf32, #tpu.memory_space<any>>) dst(%170 : memref<1x32xf32, #tpu.memory_space<vmem>>)
    %c1_i32_163 = arith.constant 1 : i32
    %c7_i32_164 = arith.constant 7 : i32
    %c0_i32_165 = arith.constant 0 : i32
    %173 = tpu.memref_slice %arg4[%104, %c0_i32_165] : memref<128x32xf32, #tpu.memory_space<any>> -> memref<1x32xf32, #tpu.memory_space<any>>
    %c7_i32_166 = arith.constant 7 : i32
    %c0_i32_167 = arith.constant 0 : i32
    %174 = tpu.memref_slice %arg14[%c7_i32_166, %c0_i32_167] : memref<8x32xf32, #tpu.memory_space<vmem>> -> memref<1x32xf32, #tpu.memory_space<vmem>>
    %175 = tpu.memref_slice %arg15[%c1_i32_163, %c7_i32_164] : memref<2x8x!tpu.dma_semaphore, #tpu.memory_space<semaphore_mem>> -> memref<1x1x!tpu.dma_semaphore, #tpu.memory_space<semaphore_mem>>
    %176 = tpu.memref_squeeze %175 : memref<1x1x!tpu.dma_semaphore, #tpu.memory_space<semaphore_mem>> -> memref<!tpu.dma_semaphore, #tpu.memory_space<semaphore_mem>>
    tpu.wait_dma2 semaphore(%176 : memref<!tpu.dma_semaphore, #tpu.memory_space<semaphore_mem>>) src(%173 : memref<1x32xf32, #tpu.memory_space<any>>) dst(%174 : memref<1x32xf32, #tpu.memory_space<vmem>>)
    %c0 = arith.constant 0 : index
    %c0_168 = arith.constant 0 : index
    %177 = vector.load %arg13[%c0, %c0_168] : memref<8x32xf32, #tpu.memory_space<vmem>>, vector<8x32xf32>
    %c0_169 = arith.constant 0 : index
    %c0_170 = arith.constant 0 : index
    %178 = vector.load %arg5[%c0_169, %c0_170] : memref<32x64xf32, #tpu.memory_space<vmem>>, vector<32x64xf32>
    %cst = arith.constant dense<0.000000e+00> : vector<8x64xf32>
    %179 = tpu.matmul %177, %178, %cst {dimension_numbers = #tpu.dot_dimension_numbers<[1], [0], [0], [1], [0, 0, 1, 1], [], []>} : vector<8x32xf32>, vector<32x64xf32>, vector<8x64xf32> -> vector<8x64xf32>
    %c0_171 = arith.constant 0 : index
    %c0_172 = arith.constant 0 : index
    %180 = vector.load %arg14[%c0_171, %c0_172] : memref<8x32xf32, #tpu.memory_space<vmem>>, vector<8x32xf32>
    %c0_173 = arith.constant 0 : index
    %c0_174 = arith.constant 0 : index
    %181 = vector.load %arg6[%c0_173, %c0_174] : memref<32x64xf32, #tpu.memory_space<vmem>>, vector<32x64xf32>
    %cst_175 = arith.constant dense<0.000000e+00> : vector<8x64xf32>
    %182 = tpu.matmul %180, %181, %cst_175 {dimension_numbers = #tpu.dot_dimension_numbers<[1], [0], [0], [1], [0, 0, 1, 1], [], []>} : vector<8x32xf32>, vector<32x64xf32>, vector<8x64xf32> -> vector<8x64xf32>
    %183 = arith.addf %179, %182 : vector<8x64xf32>
    %c0_176 = arith.constant 0 : index
    %c0_177 = arith.constant 0 : index
    %184 = vector.load %arg7[%c0_176, %c0_177] : memref<1x64xf32, #tpu.memory_space<vmem>>, vector<1x64xf32>
    %185 = vector.broadcast %184 : vector<1x64xf32> to vector<8x64xf32>
    %186 = arith.addf %183, %185 : vector<8x64xf32>
    %cst_178 = arith.constant 0.000000e+00 : f32
    %187 = vector.broadcast %cst_178 : f32 to vector<8x64xf32>
    %188 = arith.maximumf %186, %187 : vector<8x64xf32>
    %c0_179 = arith.constant 0 : index
    %c0_180 = arith.constant 0 : index
    %189 = vector.load %arg8[%c0_179, %c0_180] : memref<64x32xf32, #tpu.memory_space<vmem>>, vector<64x32xf32>
    %cst_181 = arith.constant dense<0.000000e+00> : vector<8x32xf32>
    %190 = tpu.matmul %188, %189, %cst_181 {dimension_numbers = #tpu.dot_dimension_numbers<[1], [0], [0], [1], [0, 0, 1, 1], [], []>} : vector<8x64xf32>, vector<64x32xf32>, vector<8x32xf32> -> vector<8x32xf32>
    %c0_182 = arith.constant 0 : index
    %c0_183 = arith.constant 0 : index
    %191 = vector.load %arg9[%c0_182, %c0_183] : memref<1x32xf32, #tpu.memory_space<vmem>>, vector<1x32xf32>
    %192 = vector.broadcast %191 : vector<1x32xf32> to vector<8x32xf32>
    %193 = arith.addf %190, %192 : vector<8x32xf32>
    %cst_184 = arith.constant 0.000000e+00 : f32
    %194 = vector.broadcast %cst_184 : f32 to vector<8x32xf32>
    %195 = arith.maximumf %193, %194 : vector<8x32xf32>
    %c0_185 = arith.constant 0 : index
    %c0_186 = arith.constant 0 : index
    %196 = vector.load %arg10[%c0_185, %c0_186] : memref<1x32xf32, #tpu.memory_space<vmem>>, vector<1x32xf32>
    %cst_187 = arith.constant dense<0.000000e+00> : vector<1x8xf32>
    %197 = tpu.matmul %196, %195, %cst_187 {dimension_numbers = #tpu.dot_dimension_numbers<[1], [1], [0], [0], [0, 0, 1, 0], [], []>} : vector<1x32xf32>, vector<8x32xf32>, vector<1x8xf32> -> vector<1x8xf32>
    %c0_188 = arith.constant 0 : index
    %c0_189 = arith.constant 0 : index
    %198 = memref.load %arg11[%c0_188, %c0_189] : memref<1x1xf32, #tpu.memory_space<smem>>
    %199 = vector.broadcast %198 : f32 to vector<1x8xf32>
    %200 = arith.addf %197, %199 : vector<1x8xf32>
    %201 = arith.negf %200 : vector<1x8xf32>
    %202 = math.exp %201 : vector<1x8xf32>
    %cst_190 = arith.constant 1.000000e+00 : f32
    %203 = vector.broadcast %cst_190 : f32 to vector<1x8xf32>
    %204 = arith.addf %203, %202 : vector<1x8xf32>
    %205 = arith.divf %203, %204 : vector<1x8xf32>
    %cst_191 = arith.constant 4.000000e+00 : f32
    %206 = vector.broadcast %cst_191 : f32 to vector<1x8xf32>
    %207 = arith.mulf %206, %205 : vector<1x8xf32>
    %cst_192 = arith.constant 1.000000e+00 : f32
    %208 = vector.broadcast %cst_192 : f32 to vector<1x8xf32>
    %209 = arith.addf %208, %207 : vector<1x8xf32>
    %c0_193 = arith.constant 0 : index
    %c0_194 = arith.constant 0 : index
    %210 = vector.load %arg12[%c0_193, %c0_194] : memref<1x8xf32, #tpu.memory_space<vmem>>, vector<1x8xf32>
    tpu.vector_store %arg12[%c0_193, %c0_194], %209 {strides = array<i32>} : memref<1x8xf32, #tpu.memory_space<vmem>>, vector<1x8xf32>,
    return
  }
  func.func @transform_2(%arg0: i32, %arg1: memref<8xi32, #tpu.memory_space<smem>>, %arg2: memref<8xi32, #tpu.memory_space<smem>>) -> (i32, i32) {
    %c0_i32 = arith.constant 0 : i32
    %c0_i32_0 = arith.constant 0 : i32
    %c0_i32_1 = arith.constant 0 : i32
    return %c0_i32, %c0_i32_0 : i32, i32
  }
  func.func @transform_3(%arg0: i32, %arg1: memref<8xi32, #tpu.memory_space<smem>>, %arg2: memref<8xi32, #tpu.memory_space<smem>>) -> (i32, i32) {
    %c0_i32 = arith.constant 0 : i32
    %c0_i32_0 = arith.constant 0 : i32
    %c0_i32_1 = arith.constant 0 : i32
    return %c0_i32, %c0_i32_0 : i32, i32
  }
  func.func @transform_4(%arg0: i32, %arg1: memref<8xi32, #tpu.memory_space<smem>>, %arg2: memref<8xi32, #tpu.memory_space<smem>>) -> (i32, i32) {
    %c0_i32 = arith.constant 0 : i32
    %c0_i32_0 = arith.constant 0 : i32
    %c0_i32_1 = arith.constant 0 : i32
    return %c0_i32, %c0_i32_0 : i32, i32
  }
  func.func @transform_5(%arg0: i32, %arg1: memref<8xi32, #tpu.memory_space<smem>>, %arg2: memref<8xi32, #tpu.memory_space<smem>>) -> (i32, i32) {
    %c0_i32 = arith.constant 0 : i32
    %c0_i32_0 = arith.constant 0 : i32
    %c0_i32_1 = arith.constant 0 : i32
    return %c0_i32, %c0_i32_0 : i32, i32
  }
  func.func @transform_6(%arg0: i32, %arg1: memref<8xi32, #tpu.memory_space<smem>>, %arg2: memref<8xi32, #tpu.memory_space<smem>>) -> (i32, i32) {
    %c0_i32 = arith.constant 0 : i32
    %c0_i32_0 = arith.constant 0 : i32
    %c0_i32_1 = arith.constant 0 : i32
    return %c0_i32, %c0_i32_0 : i32, i32
  }
  func.func @transform_7(%arg0: i32, %arg1: memref<8xi32, #tpu.memory_space<smem>>, %arg2: memref<8xi32, #tpu.memory_space<smem>>) -> (i32, i32) {
    %c0_i32 = arith.constant 0 : i32
    %c0_i32_0 = arith.constant 0 : i32
    %c0_i32_1 = arith.constant 0 : i32
    return %c0_i32, %c0_i32_0 : i32, i32
  }
  func.func @transform_8(%arg0: i32, %arg1: memref<8xi32, #tpu.memory_space<smem>>, %arg2: memref<8xi32, #tpu.memory_space<smem>>) -> (i32, i32) {
    %c0_i32 = arith.constant 0 : i32
    %c0_i32_0 = arith.constant 0 : i32
    %c0_i32_1 = arith.constant 0 : i32
    return %c0_i32, %c0_i32_0 : i32, i32
  }
  func.func @transform_9(%arg0: i32, %arg1: memref<8xi32, #tpu.memory_space<smem>>, %arg2: memref<8xi32, #tpu.memory_space<smem>>) -> (i32, i32) {
    %c0_i32 = arith.constant 0 : i32
    %c0_i32_0 = arith.constant 0 : i32
    return %c0_i32, %arg0 : i32, i32
  }
}

</mosaic_0001>

<llo_original>
// kernel: tpu_custom_call.1
$region0: #{tpu_custom_call.1}
  #allocation0 [shape = 'u32[]', space=smem, size = 0x4, offset = 0x4, fixed_abs, tag = 'smem constant byte address 0x4 - core index']
  #allocation1 [shape = 'u32[144,128]{1,0:T(1,128)}', space=vmem, size = 0x12000, scoped, tag = 'internal scratch']
  #allocation2 [shape = 'f32[8,32]{1,0:T(8,128)}', space=vmem, size = 0x1000, scoped, tag = 'scratch operand']
  #allocation3 [shape = 'f32[8,32]{1,0:T(8,128)}', space=vmem, size = 0x1000, scoped, tag = 'scratch operand']
  #allocation4 [shape = 's32[16]{0}', space=sflag, size = 0x40, scoped, tag = 'scratch operand']
  #allocation5 [shape = 's32[1]{0}', space=sflag, size = 0x4, scoped, tag = 'scoped memory for tpu_custom_call.1']
  #allocation6 [shape = 'u8[512]{0}', space=smem, size = 0x200, scoped, tag = 'prefetched SMEM operand 0']
  #allocation7 [shape = 'u8[512]{0}', space=smem, size = 0x200, scoped, tag = 'prefetched SMEM operand 1']
  #allocation8 [shape = 'f32[1,1]{1,0:T(1,128)S(6)}', space=smem, size = 0x200, scoped, tag = 'scoped memory for tpu_custom_call.1']
  #allocation11 [shape = 's32[]', space=sflag, size = 0x4, offset = 0, fixed_abs, tag = 'sflag constant byte address 0x0 - dummy sync flag']
  #allocation12 [shape = 's32[]', space=sflag, size = 0x4, offset = 0, fixed_abs, tag = 'sflag constant byte address 0x0 - dummy sync flag']
  #allocation13 [shape = 's32[]', space=sflag, size = 0x4, offset = 0, fixed_abs, tag = 'sflag constant byte address 0x0 - dummy sync flag']
  #allocation14 [shape = 's32[]', space=sflag, size = 0x4, offset = 0, fixed_abs, tag = 'sflag constant byte address 0x0 - dummy sync flag']
  #allocation15 [shape = 's32[]', space=sflag, size = 0x4, offset = 0, fixed_abs, tag = 'sflag constant byte address 0x0 - dummy sync flag']
  #allocation16 [shape = 's32[]', space=sflag, size = 0x4, offset = 0, fixed_abs, tag = 'sflag constant byte address 0x0 - dummy sync flag']
  #allocation17 [shape = 's32[]', space=sflag, size = 0x4, offset = 0, fixed_abs, tag = 'sflag constant byte address 0x0 - dummy sync flag']
  #allocation18 [shape = 's32[]', space=sflag, size = 0x4, offset = 0, fixed_abs, tag = 'sflag constant byte address 0x0 - dummy sync flag']
  #allocation19 [shape = 's32[]', space=sflag, size = 0x4, offset = 0, fixed_abs, tag = 'sflag constant byte address 0x0 - dummy sync flag']
  #allocation20 [shape = 's32[]', space=sflag, size = 0x4, offset = 0, fixed_abs, tag = 'sflag constant byte address 0x0 - dummy sync flag']
  #allocation21 [shape = 's32[]', space=sflag, size = 0x4, offset = 0, fixed_abs, tag = 'sflag constant byte address 0x0 - dummy sync flag']
  #allocation22 [shape = 's32[]', space=sflag, size = 0x4, offset = 0, fixed_abs, tag = 'sflag constant byte address 0x0 - dummy sync flag']
  #allocation23 [shape = 's32[]', space=sflag, size = 0x4, offset = 0, fixed_abs, tag = 'sflag constant byte address 0x0 - dummy sync flag']
  #allocation24 [shape = 's32[]', space=sflag, size = 0x4, offset = 0, fixed_abs, tag = 'sflag constant byte address 0x0 - dummy sync flag']
  #allocation25 [shape = 's32[]', space=sflag, size = 0x4, offset = 0, fixed_abs, tag = 'sflag constant byte address 0x0 - dummy sync flag']
  #allocation26 [shape = 's32[]', space=sflag, size = 0x4, offset = 0, fixed_abs, tag = 'sflag constant byte address 0x0 - dummy sync flag']
  %s0 = inlined_call_operand.vmem [shape: s32[8], index: 0, kind: input, shape index: {}]
  %s1 = inlined_call_operand.vmem [shape: s32[8], index: 1, kind: input, shape index: {}]
  %s2 = inlined_call_operand.vmem [shape: f32[64,32], index: 2, kind: input, shape index: {}]
  %s3 = inlined_call_operand.vmem [shape: f32[128,32], index: 3, kind: input, shape index: {}]
  %s4 = inlined_call_operand.vmem [shape: f32[32,64], index: 4, kind: input, shape index: {}]
  %s5 = inlined_call_operand.vmem [shape: f32[32,64], index: 5, kind: input, shape index: {}]
  %s6 = inlined_call_operand.vmem [shape: f32[1,64], index: 6, kind: input, shape index: {}]
  %s7 = inlined_call_operand.vmem [shape: f32[64,32], index: 7, kind: input, shape index: {}]
  %s8 = inlined_call_operand.vmem [shape: f32[1,32], index: 8, kind: input, shape index: {}]
  %s9 = inlined_call_operand.vmem [shape: f32[1,32], index: 9, kind: input, shape index: {}]
  %s10 = inlined_call_operand.<no memory space> [shape: f32[1,1], index: 10, kind: input, shape index: {}]
  %s11 = inlined_call_operand.hbm [shape: f32[1,8], index: 11, kind: output, shape index: {}]
  %s12 = sld [smem:[#allocation0]]
  $region518: #{tpu_custom_call.1} parent=0
    _
  %s14 = ssub.s32 1, %s12
  %s15 = scalar_select 0, %s14, %s12
  %s16 = sshll.u32 %s0, 4
  %s17 = int_to_ptr.vmem [resolvable:$true] %s16
  %19 = dma.vmem_to_smem %s17, 16, [#allocation6], [#allocation5]
  %s20 = sshll.u32 %s1, 4
  %s21 = int_to_ptr.vmem [resolvable:$true] %s20
  %23 = dma.vmem_to_smem %s21, 16, [#allocation7], [#allocation5]
  %24 = sst [smem:[#allocation8]] %s10
  %25 = dma.done [#allocation5], 32
  %26 = sfence
  $region1: #{tpu_custom_call.1} parent=0
    #allocation9 [shape = 'u8[512]{0}', space=vmem, size = 0x400, scoped, tag = 'output window, operand 0, single buffered']
    #allocation10 [shape = 's32[1]{0}', space=sflag, size = 0x4, scoped, tag = 'scoped memory for tpu_custom_call.1']
    %27 = vsyncpa [#allocation10], 0
    // Predicated region
    $region2: #{tpu_custom_call.1} parent=1 // pred_check
      _
    $region3: #{tpu_custom_call.1} parent=1 // pred_check_branch
      %29 = sbr.rel (0) target = $region5
    $region4: #{tpu_custom_call.1} parent=1 // pred_region
      _
    $region5: #{tpu_custom_call.1} parent=1 // pred_fallthru
      _
    // Predicated region
    $region6: #{tpu_custom_call.1} parent=1 // pred_check
      _
    $region7: #{tpu_custom_call.1} parent=1 // pred_check_branch
      %31 = sbr.rel (0) target = $region9
    $region8: #{tpu_custom_call.1} parent=1 // pred_region
      _
    $region9: #{tpu_custom_call.1} parent=1 // pred_fallthru
      _
    // Predicated region
    $region10: #{tpu_custom_call.1} parent=1 // pred_check
      _
    $region11: #{tpu_custom_call.1} parent=1 // pred_check_branch
      %33 = sbr.rel (0) target = $region13
    $region12: #{tpu_custom_call.1} parent=1 // pred_region
      _
    $region13: #{tpu_custom_call.1} parent=1 // pred_fallthru
      _
    // Predicated region
    $region14: #{tpu_custom_call.1} parent=1 // pred_check
      _
    $region15: #{tpu_custom_call.1} parent=1 // pred_check_branch
      %35 = sbr.rel (0) target = $region17
    $region16: #{tpu_custom_call.1} parent=1 // pred_region
      _
    $region17: #{tpu_custom_call.1} parent=1 // pred_fallthru
      _
    // Predicated region
    $region18: #{tpu_custom_call.1} parent=1 // pred_check
      _
    $region19: #{tpu_custom_call.1} parent=1 // pred_check_branch
      %37 = sbr.rel (0) target = $region21
    $region20: #{tpu_custom_call.1} parent=1 // pred_region
      _
    $region21: #{tpu_custom_call.1} parent=1 // pred_fallthru
      _
    // Predicated region
    $region22: #{tpu_custom_call.1} parent=1 // pred_check
      _
    $region23: #{tpu_custom_call.1} parent=1 // pred_check_branch
      %39 = sbr.rel (0) target = $region25
    $region24: #{tpu_custom_call.1} parent=1 // pred_region
      _
    $region25: #{tpu_custom_call.1} parent=1 // pred_fallthru
      _
    // Predicated region
    $region26: #{tpu_custom_call.1} parent=1 // pred_check
      _
    $region27: #{tpu_custom_call.1} parent=1 // pred_check_branch
      %41 = sbr.rel (0) target = $region29
    $region28: #{tpu_custom_call.1} parent=1 // pred_region
      _
    $region29: #{tpu_custom_call.1} parent=1 // pred_fallthru
      _
    %s42 = smul.u32 0, 8
    %s43 = sld [smem:[#allocation6 + %s42]]
    %s44 = sld [smem:[#allocation7 + %s42]]
    %s45 = scalar_lea.vmem %s2, %s43
    %p47 = scmp.lt.u32.totalorder 1, 8
    %p48 = pneg %p47
    // Predicated region
    $region30: #{tpu_custom_call.1} parent=1 // pred_check
      _
    $region31: #{tpu_custom_call.1} parent=1 // pred_check_branch
      %50 = sbr.rel (%p47) target = $region33
    $region32: #{tpu_custom_call.1} parent=1 // pred_region
      %s66 = sand.u32 1, 7
      %p67 = scmp.eq.s32.totalorder %s66, 0
      %p68 = pneg %p67
      // Predicated region
      $region45: #{tpu_custom_call.1} parent=32 // pred_check
        _
      $region46: #{tpu_custom_call.1} parent=32 // pred_check_branch
        %70 = sbr.rel (%p67) target = $region48
      $region47: #{tpu_custom_call.1} parent=32 // pred_region
        %s71 = sand.u32 1, 7
        %s72 = ssub.s32 1, %s71
        %s73 = scalar_lea.vmem %s45, %s72
        %s74 = ssub.s32 1, %s71
        %s75 = scalar_lea.vmem [#allocation2], %s74
        %s76 = sshll.u32 1, %s71
        %s77 = ssub.s32 %s76, 1
        loop: start=0, step=1, limit=1
        $region49: #{tpu_custom_call.1} parent=47 // loop_pre_header
          _
        $region50: #{tpu_custom_call.1} parent=47 // loop_header
          %s79 = sphi 0, %s83
          %p80 = scmp.ge.s32.totalorder %s79, 1
          %s84 = sphi %s73, %s73
          %s85 = sphi %s75, %s75
        $region51: #{tpu_custom_call.1} parent=47 // loop_header_branch
          %82 = sbr.rel (%p80) target = $region55
        $region52: #{tpu_custom_call.1} parent=47 // loop_body
          %v86 = vld [vmem:[%s84] sm:%s77]
          %87 = vst [vmem:[%s85] sm:%s77] %v86
        $region53: #{tpu_custom_call.1} parent=47 // loop_footer
          %s83 = sadd.s32 1, %s79
        $region54: #{tpu_custom_call.1} parent=47 // loop_footer_branch
          %78 = sbr.rel target = $region50
        $region55: #{tpu_custom_call.1} parent=47 // loop_exit
          _
      $region48: #{tpu_custom_call.1} parent=32 // pred_fallthru
        _
    $region33: #{tpu_custom_call.1} parent=1 // pred_fallthru
      _
    // Predicated region
    $region34: #{tpu_custom_call.1} parent=1 // pred_check
      %p51 = pneg %p47
    $region35: #{tpu_custom_call.1} parent=1 // pred_check_branch
      %53 = sbr.rel (%p51) target = $region37
    $region36: #{tpu_custom_call.1} parent=1 // pred_region
      %s54 = sshll.u32 1, 1
      %s55 = ssub.s32 %s54, 1
      loop: start=0, step=1, limit=1
      $region38: #{tpu_custom_call.1} parent=36 // loop_pre_header
        _
      $region39: #{tpu_custom_call.1} parent=36 // loop_header
        %s57 = sphi 0, %s61
        %p58 = scmp.ge.s32.totalorder %s57, 1
        %s62 = sphi %s45, %s45
        %s63 = sphi [#allocation2], [#allocation2]
      $region40: #{tpu_custom_call.1} parent=36 // loop_header_branch
        %60 = sbr.rel (%p58) target = $region44
      $region41: #{tpu_custom_call.1} parent=36 // loop_body
        %v64 = vld [vmem:[%s62] sm:%s55]
        %65 = vst [vmem:[%s63] sm:%s55] %v64
      $region42: #{tpu_custom_call.1} parent=36 // loop_footer
        %s61 = sadd.s32 1, %s57
      $region43: #{tpu_custom_call.1} parent=36 // loop_footer_branch
        %56 = sbr.rel target = $region39
      $region44: #{tpu_custom_call.1} parent=36 // loop_exit
        _
    $region37: #{tpu_custom_call.1} parent=1 // pred_fallthru
      _
    // Predicated region
    $region56: #{tpu_custom_call.1} parent=1 // pred_check
      _
    $region57: #{tpu_custom_call.1} parent=1 // pred_check_branch
      %90 = sbr.rel (0) target = $region59
    $region58: #{tpu_custom_call.1} parent=1 // pred_region
      %91 = vsyncadd [#allocation4], 16
    $region59: #{tpu_custom_call.1} parent=1 // pred_fallthru
      _
    %s92 = scalar_lea.vmem %s3, %s44
    %s93 = scalar_lea.sflag [#allocation4], 8
    %p95 = scmp.lt.u32.totalorder 1, 8
    %p96 = pneg %p95
    // Predicated region
    $region60: #{tpu_custom_call.1} parent=1 // pred_check
      _
    $region61: #{tpu_custom_call.1} parent=1 // pred_check_branch
      %98 = sbr.rel (%p95) target = $region63
    $region62: #{tpu_custom_call.1} parent=1 // pred_region
      %s114 = sand.u32 1, 7
      %p115 = scmp.eq.s32.totalorder %s114, 0
      %p116 = pneg %p115
      // Predicated region
      $region75: #{tpu_custom_call.1} parent=62 // pred_check
        _
      $region76: #{tpu_custom_call.1} parent=62 // pred_check_branch
        %118 = sbr.rel (%p115) target = $region78
      $region77: #{tpu_custom_call.1} parent=62 // pred_region
        %s119 = sand.u32 1, 7
        %s120 = ssub.s32 1, %s119
        %s121 = scalar_lea.vmem %s92, %s120
        %s122 = ssub.s32 1, %s119
        %s123 = scalar_lea.vmem [#allocation3], %s122
        %s124 = sshll.u32 1, %s119
        %s125 = ssub.s32 %s124, 1
        loop: start=0, step=1, limit=1
        $region79: #{tpu_custom_call.1} parent=77 // loop_pre_header
          _
        $region80: #{tpu_custom_call.1} parent=77 // loop_header
          %s127 = sphi 0, %s131
          %p128 = scmp.ge.s32.totalorder %s127, 1
          %s132 = sphi %s121, %s121
          %s133 = sphi %s123, %s123
        $region81: #{tpu_custom_call.1} parent=77 // loop_header_branch
          %130 = sbr.rel (%p128) target = $region85
        $region82: #{tpu_custom_call.1} parent=77 // loop_body
          %v134 = vld [vmem:[%s132] sm:%s125]
          %135 = vst [vmem:[%s133] sm:%s125] %v134
        $region83: #{tpu_custom_call.1} parent=77 // loop_footer
          %s131 = sadd.s32 1, %s127
        $region84: #{tpu_custom_call.1} parent=77 // loop_footer_branch
          %126 = sbr.rel target = $region80
        $region85: #{tpu_custom_call.1} parent=77 // loop_exit
          _
      $region78: #{tpu_custom_call.1} parent=62 // pred_fallthru
        _
    $region63: #{tpu_custom_call.1} parent=1 // pred_fallthru
      _
    // Predicated region
    $region64: #{tpu_custom_call.1} parent=1 // pred_check
      %p99 = pneg %p95
    $region65: #{tpu_custom_call.1} parent=1 // pred_check_branch
      %101 = sbr.rel (%p99) target = $region67
    $region66: #{tpu_custom_call.1} parent=1 // pred_region
      %s102 = sshll.u32 1, 1
      %s103 = ssub.s32 %s102, 1
      loop: start=0, step=1, limit=1
      $region68: #{tpu_custom_call.1} parent=66 // loop_pre_header
        _
      $region69: #{tpu_custom_call.1} parent=66 // loop_header
        %s105 = sphi 0, %s109
        %p106 = scmp.ge.s32.totalorder %s105, 1
        %s110 = sphi %s92, %s92
        %s111 = sphi [#allocation3], [#allocation3]
      $region70: #{tpu_custom_call.1} parent=66 // loop_header_branch
        %108 = sbr.rel (%p106) target = $region74
      $region71: #{tpu_custom_call.1} parent=66 // loop_body
        %v112 = vld [vmem:[%s110] sm:%s103]
        %113 = vst [vmem:[%s111] sm:%s103] %v112
      $region72: #{tpu_custom_call.1} parent=66 // loop_footer
        %s109 = sadd.s32 1, %s105
      $region73: #{tpu_custom_call.1} parent=66 // loop_footer_branch
        %104 = sbr.rel target = $region69
      $region74: #{tpu_custom_call.1} parent=66 // loop_exit
        _
    $region67: #{tpu_custom_call.1} parent=1 // pred_fallthru
      _
    // Predicated region
    $region86: #{tpu_custom_call.1} parent=1 // pred_check
      _
    $region87: #{tpu_custom_call.1} parent=1 // pred_check_branch
      %138 = sbr.rel (0) target = $region89
    $region88: #{tpu_custom_call.1} parent=1 // pred_region
      %139 = vsyncadd %s93, 16
    $region89: #{tpu_custom_call.1} parent=1 // pred_fallthru
      _
    %s140 = sadd.s32 %s42, 1
    %s141 = sld [smem:[#allocation6 + %s140]]
    %s142 = sld [smem:[#allocation7 + %s140]]
    %s143 = scalar_lea.vmem %s2, %s141
    %s144 = scalar_lea.vmem [#allocation2], 1
    %s145 = scalar_lea.sflag [#allocation4], 1
    %p147 = scmp.lt.u32.totalorder 1, 8
    %p148 = pneg %p147
    // Predicated region
    $region90: #{tpu_custom_call.1} parent=1 // pred_check
      _
    $region91: #{tpu_custom_call.1} parent=1 // pred_check_branch
      %150 = sbr.rel (%p147) target = $region93
    $region92: #{tpu_custom_call.1} parent=1 // pred_region
      %s166 = sand.u32 1, 7
      %p167 = scmp.eq.s32.totalorder %s166, 0
      %p168 = pneg %p167
      // Predicated region
      $region105: #{tpu_custom_call.1} parent=92 // pred_check
        _
      $region106: #{tpu_custom_call.1} parent=92 // pred_check_branch
        %170 = sbr.rel (%p167) target = $region108
      $region107: #{tpu_custom_call.1} parent=92 // pred_region
        %s171 = sand.u32 1, 7
        %s172 = ssub.s32 1, %s171
        %s173 = scalar_lea.vmem %s143, %s172
        %s174 = ssub.s32 1, %s171
        %s175 = scalar_lea.vmem %s144, %s174 [#allocation2]
        %s176 = sshll.u32 1, %s171
        %s177 = ssub.s32 %s176, 1
        loop: start=0, step=1, limit=1
        $region109: #{tpu_custom_call.1} parent=107 // loop_pre_header
          _
        $region110: #{tpu_custom_call.1} parent=107 // loop_header
          %s179 = sphi 0, %s183
          %p180 = scmp.ge.s32.totalorder %s179, 1
          %s184 = sphi %s173, %s173
          %s185 = sphi %s175, %s175
        $region111: #{tpu_custom_call.1} parent=107 // loop_header_branch
          %182 = sbr.rel (%p180) target = $region115
        $region112: #{tpu_custom_call.1} parent=107 // loop_body
          %v186 = vld [vmem:[%s184] sm:%s177]
          %187 = vst [vmem:[%s185] sm:%s177] %v186
        $region113: #{tpu_custom_call.1} parent=107 // loop_footer
          %s183 = sadd.s32 1, %s179
        $region114: #{tpu_custom_call.1} parent=107 // loop_footer_branch
          %178 = sbr.rel target = $region110
        $region115: #{tpu_custom_call.1} parent=107 // loop_exit
          _
      $region108: #{tpu_custom_call.1} parent=92 // pred_fallthru
        _
    $region93: #{tpu_custom_call.1} parent=1 // pred_fallthru
      _
    // Predicated region
    $region94: #{tpu_custom_call.1} parent=1 // pred_check
      %p151 = pneg %p147
    $region95: #{tpu_custom_call.1} parent=1 // pred_check_branch
      %153 = sbr.rel (%p151) target = $region97
    $region96: #{tpu_custom_call.1} parent=1 // pred_region
      %s154 = sshll.u32 1, 1
      %s155 = ssub.s32 %s154, 1
      loop: start=0, step=1, limit=1
      $region98: #{tpu_custom_call.1} parent=96 // loop_pre_header
        _
      $region99: #{tpu_custom_call.1} parent=96 // loop_header
        %s157 = sphi 0, %s161
        %p158 = scmp.ge.s32.totalorder %s157, 1
        %s162 = sphi %s143, %s143
        %s163 = sphi %s144, %s144
      $region100: #{tpu_custom_call.1} parent=96 // loop_header_branch
        %160 = sbr.rel (%p158) target = $region104
      $region101: #{tpu_custom_call.1} parent=96 // loop_body
        %v164 = vld [vmem:[%s162] sm:%s155]
        %165 = vst [vmem:[%s163] sm:%s155] %v164
      $region102: #{tpu_custom_call.1} parent=96 // loop_footer
        %s161 = sadd.s32 1, %s157
      $region103: #{tpu_custom_call.1} parent=96 // loop_footer_branch
        %156 = sbr.rel target = $region99
      $region104: #{tpu_custom_call.1} parent=96 // loop_exit
        _
    $region97: #{tpu_custom_call.1} parent=1 // pred_fallthru
      _
    // Predicated region
    $region116: #{tpu_custom_call.1} parent=1 // pred_check
      _
    $region117: #{tpu_custom_call.1} parent=1 // pred_check_branch
      %190 = sbr.rel (0) target = $region119
    $region118: #{tpu_custom_call.1} parent=1 // pred_region
      %191 = vsyncadd %s145, 16
    $region119: #{tpu_custom_call.1} parent=1 // pred_fallthru
      _
    %s192 = scalar_lea.vmem %s3, %s142
    %s193 = scalar_lea.vmem [#allocation3], 1
    %s194 = scalar_lea.sflag [#allocation4], 9
    %p196 = scmp.lt.u32.totalorder 1, 8
    %p197 = pneg %p196
    // Predicated region
    $region120: #{tpu_custom_call.1} parent=1 // pred_check
      _
    $region121: #{tpu_custom_call.1} parent=1 // pred_check_branch
      %199 = sbr.rel (%p196) target = $region123
    $region122: #{tpu_custom_call.1} parent=1 // pred_region
      %s215 = sand.u32 1, 7
      %p216 = scmp.eq.s32.totalorder %s215, 0
      %p217 = pneg %p216
      // Predicated region
      $region135: #{tpu_custom_call.1} parent=122 // pred_check
        _
      $region136: #{tpu_custom_call.1} parent=122 // pred_check_branch
        %219 = sbr.rel (%p216) target = $region138
      $region137: #{tpu_custom_call.1} parent=122 // pred_region
        %s220 = sand.u32 1, 7
        %s221 = ssub.s32 1, %s220
        %s222 = scalar_lea.vmem %s192, %s221
        %s223 = ssub.s32 1, %s220
        %s224 = scalar_lea.vmem %s193, %s223 [#allocation3]
        %s225 = sshll.u32 1, %s220
        %s226 = ssub.s32 %s225, 1
        loop: start=0, step=1, limit=1
        $region139: #{tpu_custom_call.1} parent=137 // loop_pre_header
          _
        $region140: #{tpu_custom_call.1} parent=137 // loop_header
          %s228 = sphi 0, %s232
          %p229 = scmp.ge.s32.totalorder %s228, 1
          %s233 = sphi %s222, %s222
          %s234 = sphi %s224, %s224
        $region141: #{tpu_custom_call.1} parent=137 // loop_header_branch
          %231 = sbr.rel (%p229) target = $region145
        $region142: #{tpu_custom_call.1} parent=137 // loop_body
          %v235 = vld [vmem:[%s233] sm:%s226]
          %236 = vst [vmem:[%s234] sm:%s226] %v235
        $region143: #{tpu_custom_call.1} parent=137 // loop_footer
          %s232 = sadd.s32 1, %s228
        $region144: #{tpu_custom_call.1} parent=137 // loop_footer_branch
          %227 = sbr.rel target = $region140
        $region145: #{tpu_custom_call.1} parent=137 // loop_exit
          _
      $region138: #{tpu_custom_call.1} parent=122 // pred_fallthru
        _
    $region123: #{tpu_custom_call.1} parent=1 // pred_fallthru
      _
    // Predicated region
    $region124: #{tpu_custom_call.1} parent=1 // pred_check
      %p200 = pneg %p196
    $region125: #{tpu_custom_call.1} parent=1 // pred_check_branch
      %202 = sbr.rel (%p200) target = $region127
    $region126: #{tpu_custom_call.1} parent=1 // pred_region
      %s203 = sshll.u32 1, 1
      %s204 = ssub.s32 %s203, 1
      loop: start=0, step=1, limit=1
      $region128: #{tpu_custom_call.1} parent=126 // loop_pre_header
        _
      $region129: #{tpu_custom_call.1} parent=126 // loop_header
        %s206 = sphi 0, %s210
        %p207 = scmp.ge.s32.totalorder %s206, 1
        %s211 = sphi %s192, %s192
        %s212 = sphi %s193, %s193
      $region130: #{tpu_custom_call.1} parent=126 // loop_header_branch
        %209 = sbr.rel (%p207) target = $region134
      $region131: #{tpu_custom_call.1} parent=126 // loop_body
        %v213 = vld [vmem:[%s211] sm:%s204]
        %214 = vst [vmem:[%s212] sm:%s204] %v213
      $region132: #{tpu_custom_call.1} parent=126 // loop_footer
        %s210 = sadd.s32 1, %s206
      $region133: #{tpu_custom_call.1} parent=126 // loop_footer_branch
        %205 = sbr.rel target = $region129
      $region134: #{tpu_custom_call.1} parent=126 // loop_exit
        _
    $region127: #{tpu_custom_call.1} parent=1 // pred_fallthru
      _
    // Predicated region
    $region146: #{tpu_custom_call.1} parent=1 // pred_check
      _
    $region147: #{tpu_custom_call.1} parent=1 // pred_check_branch
      %239 = sbr.rel (0) target = $region149
    $region148: #{tpu_custom_call.1} parent=1 // pred_region
      %240 = vsyncadd %s194, 16
    $region149: #{tpu_custom_call.1} parent=1 // pred_fallthru
      _
    %s241 = sadd.s32 %s42, 2
    %s242 = sld [smem:[#allocation6 + %s241]]
    %s243 = sld [smem:[#allocation7 + %s241]]
    %s244 = scalar_lea.vmem %s2, %s242
    %s245 = scalar_lea.vmem [#allocation2], 2
    %s246 = scalar_lea.sflag [#allocation4], 2
    %p248 = scmp.lt.u32.totalorder 1, 8
    %p249 = pneg %p248
    // Predicated region
    $region150: #{tpu_custom_call.1} parent=1 // pred_check
      _
    $region151: #{tpu_custom_call.1} parent=1 // pred_check_branch
      %251 = sbr.rel (%p248) target = $region153
    $region152: #{tpu_custom_call.1} parent=1 // pred_region
      %s267 = sand.u32 1, 7
      %p268 = scmp.eq.s32.totalorder %s267, 0
      %p269 = pneg %p268
      // Predicated region
      $region165: #{tpu_custom_call.1} parent=152 // pred_check
        _
      $region166: #{tpu_custom_call.1} parent=152 // pred_check_branch
        %271 = sbr.rel (%p268) target = $region168
      $region167: #{tpu_custom_call.1} parent=152 // pred_region
        %s272 = sand.u32 1, 7
        %s273 = ssub.s32 1, %s272
        %s274 = scalar_lea.vmem %s244, %s273
        %s275 = ssub.s32 1, %s272
        %s276 = scalar_lea.vmem %s245, %s275 [#allocation2]
        %s277 = sshll.u32 1, %s272
        %s278 = ssub.s32 %s277, 1
        loop: start=0, step=1, limit=1
        $region169: #{tpu_custom_call.1} parent=167 // loop_pre_header
          _
        $region170: #{tpu_custom_call.1} parent=167 // loop_header
          %s280 = sphi 0, %s284
          %p281 = scmp.ge.s32.totalorder %s280, 1
          %s285 = sphi %s274, %s274
          %s286 = sphi %s276, %s276
        $region171: #{tpu_custom_call.1} parent=167 // loop_header_branch
          %283 = sbr.rel (%p281) target = $region175
        $region172: #{tpu_custom_call.1} parent=167 // loop_body
          %v287 = vld [vmem:[%s285] sm:%s278]
          %288 = vst [vmem:[%s286] sm:%s278] %v287
        $region173: #{tpu_custom_call.1} parent=167 // loop_footer
          %s284 = sadd.s32 1, %s280
        $region174: #{tpu_custom_call.1} parent=167 // loop_footer_branch
          %279 = sbr.rel target = $region170
        $region175: #{tpu_custom_call.1} parent=167 // loop_exit
          _
      $region168: #{tpu_custom_call.1} parent=152 // pred_fallthru
        _
    $region153: #{tpu_custom_call.1} parent=1 // pred_fallthru
      _
    // Predicated region
    $region154: #{tpu_custom_call.1} parent=1 // pred_check
      %p252 = pneg %p248
    $region155: #{tpu_custom_call.1} parent=1 // pred_check_branch
      %254 = sbr.rel (%p252) target = $region157
    $region156: #{tpu_custom_call.1} parent=1 // pred_region
      %s255 = sshll.u32 1, 1
      %s256 = ssub.s32 %s255, 1
      loop: start=0, step=1, limit=1
      $region158: #{tpu_custom_call.1} parent=156 // loop_pre_header
        _
      $region159: #{tpu_custom_call.1} parent=156 // loop_header
        %s258 = sphi 0, %s262
        %p259 = scmp.ge.s32.totalorder %s258, 1
        %s263 = sphi %s244, %s244
        %s264 = sphi %s245, %s245
      $region160: #{tpu_custom_call.1} parent=156 // loop_header_branch
        %261 = sbr.rel (%p259) target = $region164
      $region161: #{tpu_custom_call.1} parent=156 // loop_body
        %v265 = vld [vmem:[%s263] sm:%s256]
        %266 = vst [vmem:[%s264] sm:%s256] %v265
      $region162: #{tpu_custom_call.1} parent=156 // loop_footer
        %s262 = sadd.s32 1, %s258
      $region163: #{tpu_custom_call.1} parent=156 // loop_footer_branch
        %257 = sbr.rel target = $region159
      $region164: #{tpu_custom_call.1} parent=156 // loop_exit
        _
    $region157: #{tpu_custom_call.1} parent=1 // pred_fallthru
      _
    // Predicated region
    $region176: #{tpu_custom_call.1} parent=1 // pred_check
      _
    $region177: #{tpu_custom_call.1} parent=1 // pred_check_branch
      %291 = sbr.rel (0) target = $region179
    $region178: #{tpu_custom_call.1} parent=1 // pred_region
      %292 = vsyncadd %s246, 16
    $region179: #{tpu_custom_call.1} parent=1 // pred_fallthru
      _
    %s293 = scalar_lea.vmem %s3, %s243
    %s294 = scalar_lea.vmem [#allocation3], 2
    %s295 = scalar_lea.sflag [#allocation4], 10
    %p297 = scmp.lt.u32.totalorder 1, 8
    %p298 = pneg %p297
    // Predicated region
    $region180: #{tpu_custom_call.1} parent=1 // pred_check
      _
    $region181: #{tpu_custom_call.1} parent=1 // pred_check_branch
      %300 = sbr.rel (%p297) target = $region183
    $region182: #{tpu_custom_call.1} parent=1 // pred_region
      %s316 = sand.u32 1, 7
      %p317 = scmp.eq.s32.totalorder %s316, 0
      %p318 = pneg %p317
      // Predicated region
      $region195: #{tpu_custom_call.1} parent=182 // pred_check
        _
      $region196: #{tpu_custom_call.1} parent=182 // pred_check_branch
        %320 = sbr.rel (%p317) target = $region198
      $region197: #{tpu_custom_call.1} parent=182 // pred_region
        %s321 = sand.u32 1, 7
        %s322 = ssub.s32 1, %s321
        %s323 = scalar_lea.vmem %s293, %s322
        %s324 = ssub.s32 1, %s321
        %s325 = scalar_lea.vmem %s294, %s324 [#allocation3]
        %s326 = sshll.u32 1, %s321
        %s327 = ssub.s32 %s326, 1
        loop: start=0, step=1, limit=1
        $region199: #{tpu_custom_call.1} parent=197 // loop_pre_header
          _
        $region200: #{tpu_custom_call.1} parent=197 // loop_header
          %s329 = sphi 0, %s333
          %p330 = scmp.ge.s32.totalorder %s329, 1
          %s334 = sphi %s323, %s323
          %s335 = sphi %s325, %s325
        $region201: #{tpu_custom_call.1} parent=197 // loop_header_branch
          %332 = sbr.rel (%p330) target = $region205
        $region202: #{tpu_custom_call.1} parent=197 // loop_body
          %v336 = vld [vmem:[%s334] sm:%s327]
          %337 = vst [vmem:[%s335] sm:%s327] %v336
        $region203: #{tpu_custom_call.1} parent=197 // loop_footer
          %s333 = sadd.s32 1, %s329
        $region204: #{tpu_custom_call.1} parent=197 // loop_footer_branch
          %328 = sbr.rel target = $region200
        $region205: #{tpu_custom_call.1} parent=197 // loop_exit
          _
      $region198: #{tpu_custom_call.1} parent=182 // pred_fallthru
        _
    $region183: #{tpu_custom_call.1} parent=1 // pred_fallthru
      _
    // Predicated region
    $region184: #{tpu_custom_call.1} parent=1 // pred_check
      %p301 = pneg %p297
    $region185: #{tpu_custom_call.1} parent=1 // pred_check_branch
      %303 = sbr.rel (%p301) target = $region187
    $region186: #{tpu_custom_call.1} parent=1 // pred_region
      %s304 = sshll.u32 1, 1
      %s305 = ssub.s32 %s304, 1
      loop: start=0, step=1, limit=1
      $region188: #{tpu_custom_call.1} parent=186 // loop_pre_header
        _
      $region189: #{tpu_custom_call.1} parent=186 // loop_header
        %s307 = sphi 0, %s311
        %p308 = scmp.ge.s32.totalorder %s307, 1
        %s312 = sphi %s293, %s293
        %s313 = sphi %s294, %s294
      $region190: #{tpu_custom_call.1} parent=186 // loop_header_branch
        %310 = sbr.rel (%p308) target = $region194
      $region191: #{tpu_custom_call.1} parent=186 // loop_body
        %v314 = vld [vmem:[%s312] sm:%s305]
        %315 = vst [vmem:[%s313] sm:%s305] %v314
      $region192: #{tpu_custom_call.1} parent=186 // loop_footer
        %s311 = sadd.s32 1, %s307
      $region193: #{tpu_custom_call.1} parent=186 // loop_footer_branch
        %306 = sbr.rel target = $region189
      $region194: #{tpu_custom_call.1} parent=186 // loop_exit
        _
    $region187: #{tpu_custom_call.1} parent=1 // pred_fallthru
      _
    // Predicated region
    $region206: #{tpu_custom_call.1} parent=1 // pred_check
      _
    $region207: #{tpu_custom_call.1} parent=1 // pred_check_branch
      %340 = sbr.rel (0) target = $region209
    $region208: #{tpu_custom_call.1} parent=1 // pred_region
      %341 = vsyncadd %s295, 16
    $region209: #{tpu_custom_call.1} parent=1 // pred_fallthru
      _
    %s342 = sadd.s32 %s42, 3
    %s343 = sld [smem:[#allocation6 + %s342]]
    %s344 = sld [smem:[#allocation7 + %s342]]
    %s345 = scalar_lea.vmem %s2, %s343
    %s346 = scalar_lea.vmem [#allocation2], 3
    %s347 = scalar_lea.sflag [#allocation4], 3
    %p349 = scmp.lt.u32.totalorder 1, 8
    %p350 = pneg %p349
    // Predicated region
    $region210: #{tpu_custom_call.1} parent=1 // pred_check
      _
    $region211: #{tpu_custom_call.1} parent=1 // pred_check_branch
      %352 = sbr.rel (%p349) target = $region213
    $region212: #{tpu_custom_call.1} parent=1 // pred_region
      %s368 = sand.u32 1, 7
      %p369 = scmp.eq.s32.totalorder %s368, 0
      %p370 = pneg %p369
      // Predicated region
      $region225: #{tpu_custom_call.1} parent=212 // pred_check
        _
      $region226: #{tpu_custom_call.1} parent=212 // pred_check_branch
        %372 = sbr.rel (%p369) target = $region228
      $region227: #{tpu_custom_call.1} parent=212 // pred_region
        %s373 = sand.u32 1, 7
        %s374 = ssub.s32 1, %s373
        %s375 = scalar_lea.vmem %s345, %s374
        %s376 = ssub.s32 1, %s373
        %s377 = scalar_lea.vmem %s346, %s376 [#allocation2]
        %s378 = sshll.u32 1, %s373
        %s379 = ssub.s32 %s378, 1
        loop: start=0, step=1, limit=1
        $region229: #{tpu_custom_call.1} parent=227 // loop_pre_header
          _
        $region230: #{tpu_custom_call.1} parent=227 // loop_header
          %s381 = sphi 0, %s385
          %p382 = scmp.ge.s32.totalorder %s381, 1
          %s386 = sphi %s375, %s375
          %s387 = sphi %s377, %s377
        $region231: #{tpu_custom_call.1} parent=227 // loop_header_branch
          %384 = sbr.rel (%p382) target = $region235
        $region232: #{tpu_custom_call.1} parent=227 // loop_body
          %v388 = vld [vmem:[%s386] sm:%s379]
          %389 = vst [vmem:[%s387] sm:%s379] %v388
        $region233: #{tpu_custom_call.1} parent=227 // loop_footer
          %s385 = sadd.s32 1, %s381
        $region234: #{tpu_custom_call.1} parent=227 // loop_footer_branch
          %380 = sbr.rel target = $region230
        $region235: #{tpu_custom_call.1} parent=227 // loop_exit
          _
      $region228: #{tpu_custom_call.1} parent=212 // pred_fallthru
        _
    $region213: #{tpu_custom_call.1} parent=1 // pred_fallthru
      _
    // Predicated region
    $region214: #{tpu_custom_call.1} parent=1 // pred_check
      %p353 = pneg %p349
    $region215: #{tpu_custom_call.1} parent=1 // pred_check_branch
      %355 = sbr.rel (%p353) target = $region217
    $region216: #{tpu_custom_call.1} parent=1 // pred_region
      %s356 = sshll.u32 1, 1
      %s357 = ssub.s32 %s356, 1
      loop: start=0, step=1, limit=1
      $region218: #{tpu_custom_call.1} parent=216 // loop_pre_header
        _
      $region219: #{tpu_custom_call.1} parent=216 // loop_header
        %s359 = sphi 0, %s363
        %p360 = scmp.ge.s32.totalorder %s359, 1
        %s364 = sphi %s345, %s345
        %s365 = sphi %s346, %s346
      $region220: #{tpu_custom_call.1} parent=216 // loop_header_branch
        %362 = sbr.rel (%p360) target = $region224
      $region221: #{tpu_custom_call.1} parent=216 // loop_body
        %v366 = vld [vmem:[%s364] sm:%s357]
        %367 = vst [vmem:[%s365] sm:%s357] %v366
      $region222: #{tpu_custom_call.1} parent=216 // loop_footer
        %s363 = sadd.s32 1, %s359
      $region223: #{tpu_custom_call.1} parent=216 // loop_footer_branch
        %358 = sbr.rel target = $region219
      $region224: #{tpu_custom_call.1} parent=216 // loop_exit
        _
    $region217: #{tpu_custom_call.1} parent=1 // pred_fallthru
      _
    // Predicated region
    $region236: #{tpu_custom_call.1} parent=1 // pred_check
      _
    $region237: #{tpu_custom_call.1} parent=1 // pred_check_branch
      %392 = sbr.rel (0) target = $region239
    $region238: #{tpu_custom_call.1} parent=1 // pred_region
      %393 = vsyncadd %s347, 16
    $region239: #{tpu_custom_call.1} parent=1 // pred_fallthru
      _
    %s394 = scalar_lea.vmem %s3, %s344
    %s395 = scalar_lea.vmem [#allocation3], 3
    %s396 = scalar_lea.sflag [#allocation4], 11
    %p398 = scmp.lt.u32.totalorder 1, 8
    %p399 = pneg %p398
    // Predicated region
    $region240: #{tpu_custom_call.1} parent=1 // pred_check
      _
    $region241: #{tpu_custom_call.1} parent=1 // pred_check_branch
      %401 = sbr.rel (%p398) target = $region243
    $region242: #{tpu_custom_call.1} parent=1 // pred_region
      %s417 = sand.u32 1, 7
      %p418 = scmp.eq.s32.totalorder %s417, 0
      %p419 = pneg %p418
      // Predicated region
      $region255: #{tpu_custom_call.1} parent=242 // pred_check
        _
      $region256: #{tpu_custom_call.1} parent=242 // pred_check_branch
        %421 = sbr.rel (%p418) target = $region258
      $region257: #{tpu_custom_call.1} parent=242 // pred_region
        %s422 = sand.u32 1, 7
        %s423 = ssub.s32 1, %s422
        %s424 = scalar_lea.vmem %s394, %s423
        %s425 = ssub.s32 1, %s422
        %s426 = scalar_lea.vmem %s395, %s425 [#allocation3]
        %s427 = sshll.u32 1, %s422
        %s428 = ssub.s32 %s427, 1
        loop: start=0, step=1, limit=1
        $region259: #{tpu_custom_call.1} parent=257 // loop_pre_header
          _
        $region260: #{tpu_custom_call.1} parent=257 // loop_header
          %s430 = sphi 0, %s434
          %p431 = scmp.ge.s32.totalorder %s430, 1
          %s435 = sphi %s424, %s424
          %s436 = sphi %s426, %s426
        $region261: #{tpu_custom_call.1} parent=257 // loop_header_branch
          %433 = sbr.rel (%p431) target = $region265
        $region262: #{tpu_custom_call.1} parent=257 // loop_body
          %v437 = vld [vmem:[%s435] sm:%s428]
          %438 = vst [vmem:[%s436] sm:%s428] %v437
        $region263: #{tpu_custom_call.1} parent=257 // loop_footer
          %s434 = sadd.s32 1, %s430
        $region264: #{tpu_custom_call.1} parent=257 // loop_footer_branch
          %429 = sbr.rel target = $region260
        $region265: #{tpu_custom_call.1} parent=257 // loop_exit
          _
      $region258: #{tpu_custom_call.1} parent=242 // pred_fallthru
        _
    $region243: #{tpu_custom_call.1} parent=1 // pred_fallthru
      _
    // Predicated region
    $region244: #{tpu_custom_call.1} parent=1 // pred_check
      %p402 = pneg %p398
    $region245: #{tpu_custom_call.1} parent=1 // pred_check_branch
      %404 = sbr.rel (%p402) target = $region247
    $region246: #{tpu_custom_call.1} parent=1 // pred_region
      %s405 = sshll.u32 1, 1
      %s406 = ssub.s32 %s405, 1
      loop: start=0, step=1, limit=1
      $region248: #{tpu_custom_call.1} parent=246 // loop_pre_header
        _
      $region249: #{tpu_custom_call.1} parent=246 // loop_header
        %s408 = sphi 0, %s412
        %p409 = scmp.ge.s32.totalorder %s408, 1
        %s413 = sphi %s394, %s394
        %s414 = sphi %s395, %s395
      $region250: #{tpu_custom_call.1} parent=246 // loop_header_branch
        %411 = sbr.rel (%p409) target = $region254
      $region251: #{tpu_custom_call.1} parent=246 // loop_body
        %v415 = vld [vmem:[%s413] sm:%s406]
        %416 = vst [vmem:[%s414] sm:%s406] %v415
      $region252: #{tpu_custom_call.1} parent=246 // loop_footer
        %s412 = sadd.s32 1, %s408
      $region253: #{tpu_custom_call.1} parent=246 // loop_footer_branch
        %407 = sbr.rel target = $region249
      $region254: #{tpu_custom_call.1} parent=246 // loop_exit
        _
    $region247: #{tpu_custom_call.1} parent=1 // pred_fallthru
      _
    // Predicated region
    $region266: #{tpu_custom_call.1} parent=1 // pred_check
      _
    $region267: #{tpu_custom_call.1} parent=1 // pred_check_branch
      %441 = sbr.rel (0) target = $region269
    $region268: #{tpu_custom_call.1} parent=1 // pred_region
      %442 = vsyncadd %s396, 16
    $region269: #{tpu_custom_call.1} parent=1 // pred_fallthru
      _
    %s443 = sadd.s32 %s42, 4
    %s444 = sld [smem:[#allocation6 + %s443]]
    %s445 = sld [smem:[#allocation7 + %s443]]
    %s446 = scalar_lea.vmem %s2, %s444
    %s447 = scalar_lea.vmem [#allocation2], 4
    %s448 = scalar_lea.sflag [#allocation4], 4
    %p450 = scmp.lt.u32.totalorder 1, 8
    %p451 = pneg %p450
    // Predicated region
    $region270: #{tpu_custom_call.1} parent=1 // pred_check
      _
    $region271: #{tpu_custom_call.1} parent=1 // pred_check_branch
      %453 = sbr.rel (%p450) target = $region273
    $region272: #{tpu_custom_call.1} parent=1 // pred_region
      %s469 = sand.u32 1, 7
      %p470 = scmp.eq.s32.totalorder %s469, 0
      %p471 = pneg %p470
      // Predicated region
      $region285: #{tpu_custom_call.1} parent=272 // pred_check
        _
      $region286: #{tpu_custom_call.1} parent=272 // pred_check_branch
        %473 = sbr.rel (%p470) target = $region288
      $region287: #{tpu_custom_call.1} parent=272 // pred_region
        %s474 = sand.u32 1, 7
        %s475 = ssub.s32 1, %s474
        %s476 = scalar_lea.vmem %s446, %s475
        %s477 = ssub.s32 1, %s474
        %s478 = scalar_lea.vmem %s447, %s477 [#allocation2]
        %s479 = sshll.u32 1, %s474
        %s480 = ssub.s32 %s479, 1
        loop: start=0, step=1, limit=1
        $region289: #{tpu_custom_call.1} parent=287 // loop_pre_header
          _
        $region290: #{tpu_custom_call.1} parent=287 // loop_header
          %s482 = sphi 0, %s486
          %p483 = scmp.ge.s32.totalorder %s482, 1
          %s487 = sphi %s476, %s476
          %s488 = sphi %s478, %s478
        $region291: #{tpu_custom_call.1} parent=287 // loop_header_branch
          %485 = sbr.rel (%p483) target = $region295
        $region292: #{tpu_custom_call.1} parent=287 // loop_body
          %v489 = vld [vmem:[%s487] sm:%s480]
          %490 = vst [vmem:[%s488] sm:%s480] %v489
        $region293: #{tpu_custom_call.1} parent=287 // loop_footer
          %s486 = sadd.s32 1, %s482
        $region294: #{tpu_custom_call.1} parent=287 // loop_footer_branch
          %481 = sbr.rel target = $region290
        $region295: #{tpu_custom_call.1} parent=287 // loop_exit
          _
      $region288: #{tpu_custom_call.1} parent=272 // pred_fallthru
        _
    $region273: #{tpu_custom_call.1} parent=1 // pred_fallthru
      _
    // Predicated region
    $region274: #{tpu_custom_call.1} parent=1 // pred_check
      %p454 = pneg %p450
    $region275: #{tpu_custom_call.1} parent=1 // pred_check_branch
      %456 = sbr.rel (%p454) target = $region277
    $region276: #{tpu_custom_call.1} parent=1 // pred_region
      %s457 = sshll.u32 1, 1
      %s458 = ssub.s32 %s457, 1
      loop: start=0, step=1, limit=1
      $region278: #{tpu_custom_call.1} parent=276 // loop_pre_header
        _
      $region279: #{tpu_custom_call.1} parent=276 // loop_header
        %s460 = sphi 0, %s464
        %p461 = scmp.ge.s32.totalorder %s460, 1
        %s465 = sphi %s446, %s446
        %s466 = sphi %s447, %s447
      $region280: #{tpu_custom_call.1} parent=276 // loop_header_branch
        %463 = sbr.rel (%p461) target = $region284
      $region281: #{tpu_custom_call.1} parent=276 // loop_body
        %v467 = vld [vmem:[%s465] sm:%s458]
        %468 = vst [vmem:[%s466] sm:%s458] %v467
      $region282: #{tpu_custom_call.1} parent=276 // loop_footer
        %s464 = sadd.s32 1, %s460
      $region283: #{tpu_custom_call.1} parent=276 // loop_footer_branch
        %459 = sbr.rel target = $region279
      $region284: #{tpu_custom_call.1} parent=276 // loop_exit
        _
    $region277: #{tpu_custom_call.1} parent=1 // pred_fallthru
      _
    // Predicated region
    $region296: #{tpu_custom_call.1} parent=1 // pred_check
      _
    $region297: #{tpu_custom_call.1} parent=1 // pred_check_branch
      %493 = sbr.rel (0) target = $region299
    $region298: #{tpu_custom_call.1} parent=1 // pred_region
      %494 = vsyncadd %s448, 16
    $region299: #{tpu_custom_call.1} parent=1 // pred_fallthru
      _
    %s495 = scalar_lea.vmem %s3, %s445
    %s496 = scalar_lea.vmem [#allocation3], 4
    %s497 = scalar_lea.sflag [#allocation4], 12
    %p499 = scmp.lt.u32.totalorder 1, 8
    %p500 = pneg %p499
    // Predicated region
    $region300: #{tpu_custom_call.1} parent=1 // pred_check
      _
    $region301: #{tpu_custom_call.1} parent=1 // pred_check_branch
      %502 = sbr.rel (%p499) target = $region303
    $region302: #{tpu_custom_call.1} parent=1 // pred_region
      %s518 = sand.u32 1, 7
      %p519 = scmp.eq.s32.totalorder %s518, 0
      %p520 = pneg %p519
      // Predicated region
      $region315: #{tpu_custom_call.1} parent=302 // pred_check
        _
      $region316: #{tpu_custom_call.1} parent=302 // pred_check_branch
        %522 = sbr.rel (%p519) target = $region318
      $region317: #{tpu_custom_call.1} parent=302 // pred_region
        %s523 = sand.u32 1, 7
        %s524 = ssub.s32 1, %s523
        %s525 = scalar_lea.vmem %s495, %s524
        %s526 = ssub.s32 1, %s523
        %s527 = scalar_lea.vmem %s496, %s526 [#allocation3]
        %s528 = sshll.u32 1, %s523
        %s529 = ssub.s32 %s528, 1
        loop: start=0, step=1, limit=1
        $region319: #{tpu_custom_call.1} parent=317 // loop_pre_header
          _
        $region320: #{tpu_custom_call.1} parent=317 // loop_header
          %s531 = sphi 0, %s535
          %p532 = scmp.ge.s32.totalorder %s531, 1
          %s536 = sphi %s525, %s525
          %s537 = sphi %s527, %s527
        $region321: #{tpu_custom_call.1} parent=317 // loop_header_branch
          %534 = sbr.rel (%p532) target = $region325
        $region322: #{tpu_custom_call.1} parent=317 // loop_body
          %v538 = vld [vmem:[%s536] sm:%s529]
          %539 = vst [vmem:[%s537] sm:%s529] %v538
        $region323: #{tpu_custom_call.1} parent=317 // loop_footer
          %s535 = sadd.s32 1, %s531
        $region324: #{tpu_custom_call.1} parent=317 // loop_footer_branch
          %530 = sbr.rel target = $region320
        $region325: #{tpu_custom_call.1} parent=317 // loop_exit
          _
      $region318: #{tpu_custom_call.1} parent=302 // pred_fallthru
        _
    $region303: #{tpu_custom_call.1} parent=1 // pred_fallthru
      _
    // Predicated region
    $region304: #{tpu_custom_call.1} parent=1 // pred_check
      %p503 = pneg %p499
    $region305: #{tpu_custom_call.1} parent=1 // pred_check_branch
      %505 = sbr.rel (%p503) target = $region307
    $region306: #{tpu_custom_call.1} parent=1 // pred_region
      %s506 = sshll.u32 1, 1
      %s507 = ssub.s32 %s506, 1
      loop: start=0, step=1, limit=1
      $region308: #{tpu_custom_call.1} parent=306 // loop_pre_header
        _
      $region309: #{tpu_custom_call.1} parent=306 // loop_header
        %s509 = sphi 0, %s513
        %p510 = scmp.ge.s32.totalorder %s509, 1
        %s514 = sphi %s495, %s495
        %s515 = sphi %s496, %s496
      $region310: #{tpu_custom_call.1} parent=306 // loop_header_branch
        %512 = sbr.rel (%p510) target = $region314
      $region311: #{tpu_custom_call.1} parent=306 // loop_body
        %v516 = vld [vmem:[%s514] sm:%s507]
        %517 = vst [vmem:[%s515] sm:%s507] %v516
      $region312: #{tpu_custom_call.1} parent=306 // loop_footer
        %s513 = sadd.s32 1, %s509
      $region313: #{tpu_custom_call.1} parent=306 // loop_footer_branch
        %508 = sbr.rel target = $region309
      $region314: #{tpu_custom_call.1} parent=306 // loop_exit
        _
    $region307: #{tpu_custom_call.1} parent=1 // pred_fallthru
      _
    // Predicated region
    $region326: #{tpu_custom_call.1} parent=1 // pred_check
      _
    $region327: #{tpu_custom_call.1} parent=1 // pred_check_branch
      %542 = sbr.rel (0) target = $region329
    $region328: #{tpu_custom_call.1} parent=1 // pred_region
      %543 = vsyncadd %s497, 16
    $region329: #{tpu_custom_call.1} parent=1 // pred_fallthru
      _
    %s544 = sadd.s32 %s42, 5
    %s545 = sld [smem:[#allocation6 + %s544]]
    %s546 = sld [smem:[#allocation7 + %s544]]
    %s547 = scalar_lea.vmem %s2, %s545
    %s548 = scalar_lea.vmem [#allocation2], 5
    %s549 = scalar_lea.sflag [#allocation4], 5
    %p551 = scmp.lt.u32.totalorder 1, 8
    %p552 = pneg %p551
    // Predicated region
    $region330: #{tpu_custom_call.1} parent=1 // pred_check
      _
    $region331: #{tpu_custom_call.1} parent=1 // pred_check_branch
      %554 = sbr.rel (%p551) target = $region333
    $region332: #{tpu_custom_call.1} parent=1 // pred_region
      %s570 = sand.u32 1, 7
      %p571 = scmp.eq.s32.totalorder %s570, 0
      %p572 = pneg %p571
      // Predicated region
      $region345: #{tpu_custom_call.1} parent=332 // pred_check
        _
      $region346: #{tpu_custom_call.1} parent=332 // pred_check_branch
        %574 = sbr.rel (%p571) target = $region348
      $region347: #{tpu_custom_call.1} parent=332 // pred_region
        %s575 = sand.u32 1, 7
        %s576 = ssub.s32 1, %s575
        %s577 = scalar_lea.vmem %s547, %s576
        %s578 = ssub.s32 1, %s575
        %s579 = scalar_lea.vmem %s548, %s578 [#allocation2]
        %s580 = sshll.u32 1, %s575
        %s581 = ssub.s32 %s580, 1
        loop: start=0, step=1, limit=1
        $region349: #{tpu_custom_call.1} parent=347 // loop_pre_header
          _
        $region350: #{tpu_custom_call.1} parent=347 // loop_header
          %s583 = sphi 0, %s587
          %p584 = scmp.ge.s32.totalorder %s583, 1
          %s588 = sphi %s577, %s577
          %s589 = sphi %s579, %s579
        $region351: #{tpu_custom_call.1} parent=347 // loop_header_branch
          %586 = sbr.rel (%p584) target = $region355
        $region352: #{tpu_custom_call.1} parent=347 // loop_body
          %v590 = vld [vmem:[%s588] sm:%s581]
          %591 = vst [vmem:[%s589] sm:%s581] %v590
        $region353: #{tpu_custom_call.1} parent=347 // loop_footer
          %s587 = sadd.s32 1, %s583
        $region354: #{tpu_custom_call.1} parent=347 // loop_footer_branch
          %582 = sbr.rel target = $region350
        $region355: #{tpu_custom_call.1} parent=347 // loop_exit
          _
      $region348: #{tpu_custom_call.1} parent=332 // pred_fallthru
        _
    $region333: #{tpu_custom_call.1} parent=1 // pred_fallthru
      _
    // Predicated region
    $region334: #{tpu_custom_call.1} parent=1 // pred_check
      %p555 = pneg %p551
    $region335: #{tpu_custom_call.1} parent=1 // pred_check_branch
      %557 = sbr.rel (%p555) target = $region337
    $region336: #{tpu_custom_call.1} parent=1 // pred_region
      %s558 = sshll.u32 1, 1
      %s559 = ssub.s32 %s558, 1
      loop: start=0, step=1, limit=1
      $region338: #{tpu_custom_call.1} parent=336 // loop_pre_header
        _
      $region339: #{tpu_custom_call.1} parent=336 // loop_header
        %s561 = sphi 0, %s565
        %p562 = scmp.ge.s32.totalorder %s561, 1
        %s566 = sphi %s547, %s547
        %s567 = sphi %s548, %s548
      $region340: #{tpu_custom_call.1} parent=336 // loop_header_branch
        %564 = sbr.rel (%p562) target = $region344
      $region341: #{tpu_custom_call.1} parent=336 // loop_body
        %v568 = vld [vmem:[%s566] sm:%s559]
        %569 = vst [vmem:[%s567] sm:%s559] %v568
      $region342: #{tpu_custom_call.1} parent=336 // loop_footer
        %s565 = sadd.s32 1, %s561
      $region343: #{tpu_custom_call.1} parent=336 // loop_footer_branch
        %560 = sbr.rel target = $region339
      $region344: #{tpu_custom_call.1} parent=336 // loop_exit
        _
    $region337: #{tpu_custom_call.1} parent=1 // pred_fallthru
      _
    // Predicated region
    $region356: #{tpu_custom_call.1} parent=1 // pred_check
      _
    $region357: #{tpu_custom_call.1} parent=1 // pred_check_branch
      %594 = sbr.rel (0) target = $region359
    $region358: #{tpu_custom_call.1} parent=1 // pred_region
      %595 = vsyncadd %s549, 16
    $region359: #{tpu_custom_call.1} parent=1 // pred_fallthru
      _
    %s596 = scalar_lea.vmem %s3, %s546
    %s597 = scalar_lea.vmem [#allocation3], 5
    %s598 = scalar_lea.sflag [#allocation4], 13
    %p600 = scmp.lt.u32.totalorder 1, 8
    %p601 = pneg %p600
    // Predicated region
    $region360: #{tpu_custom_call.1} parent=1 // pred_check
      _
    $region361: #{tpu_custom_call.1} parent=1 // pred_check_branch
      %603 = sbr.rel (%p600) target = $region363
    $region362: #{tpu_custom_call.1} parent=1 // pred_region
      %s619 = sand.u32 1, 7
      %p620 = scmp.eq.s32.totalorder %s619, 0
      %p621 = pneg %p620
      // Predicated region
      $region375: #{tpu_custom_call.1} parent=362 // pred_check
        _
      $region376: #{tpu_custom_call.1} parent=362 // pred_check_branch
        %623 = sbr.rel (%p620) target = $region378
      $region377: #{tpu_custom_call.1} parent=362 // pred_region
        %s624 = sand.u32 1, 7
        %s625 = ssub.s32 1, %s624
        %s626 = scalar_lea.vmem %s596, %s625
        %s627 = ssub.s32 1, %s624
        %s628 = scalar_lea.vmem %s597, %s627 [#allocation3]
        %s629 = sshll.u32 1, %s624
        %s630 = ssub.s32 %s629, 1
        loop: start=0, step=1, limit=1
        $region379: #{tpu_custom_call.1} parent=377 // loop_pre_header
          _
        $region380: #{tpu_custom_call.1} parent=377 // loop_header
          %s632 = sphi 0, %s636
          %p633 = scmp.ge.s32.totalorder %s632, 1
          %s637 = sphi %s626, %s626
          %s638 = sphi %s628, %s628
        $region381: #{tpu_custom_call.1} parent=377 // loop_header_branch
          %635 = sbr.rel (%p633) target = $region385
        $region382: #{tpu_custom_call.1} parent=377 // loop_body
          %v639 = vld [vmem:[%s637] sm:%s630]
          %640 = vst [vmem:[%s638] sm:%s630] %v639
        $region383: #{tpu_custom_call.1} parent=377 // loop_footer
          %s636 = sadd.s32 1, %s632
        $region384: #{tpu_custom_call.1} parent=377 // loop_footer_branch
          %631 = sbr.rel target = $region380
        $region385: #{tpu_custom_call.1} parent=377 // loop_exit
          _
      $region378: #{tpu_custom_call.1} parent=362 // pred_fallthru
        _
    $region363: #{tpu_custom_call.1} parent=1 // pred_fallthru
      _
    // Predicated region
    $region364: #{tpu_custom_call.1} parent=1 // pred_check
      %p604 = pneg %p600
    $region365: #{tpu_custom_call.1} parent=1 // pred_check_branch
      %606 = sbr.rel (%p604) target = $region367
    $region366: #{tpu_custom_call.1} parent=1 // pred_region
      %s607 = sshll.u32 1, 1
      %s608 = ssub.s32 %s607, 1
      loop: start=0, step=1, limit=1
      $region368: #{tpu_custom_call.1} parent=366 // loop_pre_header
        _
      $region369: #{tpu_custom_call.1} parent=366 // loop_header
        %s610 = sphi 0, %s614
        %p611 = scmp.ge.s32.totalorder %s610, 1
        %s615 = sphi %s596, %s596
        %s616 = sphi %s597, %s597
      $region370: #{tpu_custom_call.1} parent=366 // loop_header_branch
        %613 = sbr.rel (%p611) target = $region374
      $region371: #{tpu_custom_call.1} parent=366 // loop_body
        %v617 = vld [vmem:[%s615] sm:%s608]
        %618 = vst [vmem:[%s616] sm:%s608] %v617
      $region372: #{tpu_custom_call.1} parent=366 // loop_footer
        %s614 = sadd.s32 1, %s610
      $region373: #{tpu_custom_call.1} parent=366 // loop_footer_branch
        %609 = sbr.rel target = $region369
      $region374: #{tpu_custom_call.1} parent=366 // loop_exit
        _
    $region367: #{tpu_custom_call.1} parent=1 // pred_fallthru
      _
    // Predicated region
    $region386: #{tpu_custom_call.1} parent=1 // pred_check
      _
    $region387: #{tpu_custom_call.1} parent=1 // pred_check_branch
      %643 = sbr.rel (0) target = $region389
    $region388: #{tpu_custom_call.1} parent=1 // pred_region
      %644 = vsyncadd %s598, 16
    $region389: #{tpu_custom_call.1} parent=1 // pred_fallthru
      _
    %s645 = sadd.s32 %s42, 6
    %s646 = sld [smem:[#allocation6 + %s645]]
    %s647 = sld [smem:[#allocation7 + %s645]]
    %s648 = scalar_lea.vmem %s2, %s646
    %s649 = scalar_lea.vmem [#allocation2], 6
    %s650 = scalar_lea.sflag [#allocation4], 6
    %p652 = scmp.lt.u32.totalorder 1, 8
    %p653 = pneg %p652
    // Predicated region
    $region390: #{tpu_custom_call.1} parent=1 // pred_check
      _
    $region391: #{tpu_custom_call.1} parent=1 // pred_check_branch
      %655 = sbr.rel (%p652) target = $region393
    $region392: #{tpu_custom_call.1} parent=1 // pred_region
      %s671 = sand.u32 1, 7
      %p672 = scmp.eq.s32.totalorder %s671, 0
      %p673 = pneg %p672
      // Predicated region
      $region405: #{tpu_custom_call.1} parent=392 // pred_check
        _
      $region406: #{tpu_custom_call.1} parent=392 // pred_check_branch
        %675 = sbr.rel (%p672) target = $region408
      $region407: #{tpu_custom_call.1} parent=392 // pred_region
        %s676 = sand.u32 1, 7
        %s677 = ssub.s32 1, %s676
        %s678 = scalar_lea.vmem %s648, %s677
        %s679 = ssub.s32 1, %s676
        %s680 = scalar_lea.vmem %s649, %s679 [#allocation2]
        %s681 = sshll.u32 1, %s676
        %s682 = ssub.s32 %s681, 1
        loop: start=0, step=1, limit=1
        $region409: #{tpu_custom_call.1} parent=407 // loop_pre_header
          _
        $region410: #{tpu_custom_call.1} parent=407 // loop_header
          %s684 = sphi 0, %s688
          %p685 = scmp.ge.s32.totalorder %s684, 1
          %s689 = sphi %s678, %s678
          %s690 = sphi %s680, %s680
        $region411: #{tpu_custom_call.1} parent=407 // loop_header_branch
          %687 = sbr.rel (%p685) target = $region415
        $region412: #{tpu_custom_call.1} parent=407 // loop_body
          %v691 = vld [vmem:[%s689] sm:%s682]
          %692 = vst [vmem:[%s690] sm:%s682] %v691
        $region413: #{tpu_custom_call.1} parent=407 // loop_footer
          %s688 = sadd.s32 1, %s684
        $region414: #{tpu_custom_call.1} parent=407 // loop_footer_branch
          %683 = sbr.rel target = $region410
        $region415: #{tpu_custom_call.1} parent=407 // loop_exit
          _
      $region408: #{tpu_custom_call.1} parent=392 // pred_fallthru
        _
    $region393: #{tpu_custom_call.1} parent=1 // pred_fallthru
      _
    // Predicated region
    $region394: #{tpu_custom_call.1} parent=1 // pred_check
      %p656 = pneg %p652
    $region395: #{tpu_custom_call.1} parent=1 // pred_check_branch
      %658 = sbr.rel (%p656) target = $region397
    $region396: #{tpu_custom_call.1} parent=1 // pred_region
      %s659 = sshll.u32 1, 1
      %s660 = ssub.s32 %s659, 1
      loop: start=0, step=1, limit=1
      $region398: #{tpu_custom_call.1} parent=396 // loop_pre_header
        _
      $region399: #{tpu_custom_call.1} parent=396 // loop_header
        %s662 = sphi 0, %s666
        %p663 = scmp.ge.s32.totalorder %s662, 1
        %s667 = sphi %s648, %s648
        %s668 = sphi %s649, %s649
      $region400: #{tpu_custom_call.1} parent=396 // loop_header_branch
        %665 = sbr.rel (%p663) target = $region404
      $region401: #{tpu_custom_call.1} parent=396 // loop_body
        %v669 = vld [vmem:[%s667] sm:%s660]
        %670 = vst [vmem:[%s668] sm:%s660] %v669
      $region402: #{tpu_custom_call.1} parent=396 // loop_footer
        %s666 = sadd.s32 1, %s662
      $region403: #{tpu_custom_call.1} parent=396 // loop_footer_branch
        %661 = sbr.rel target = $region399
      $region404: #{tpu_custom_call.1} parent=396 // loop_exit
        _
    $region397: #{tpu_custom_call.1} parent=1 // pred_fallthru
      _
    // Predicated region
    $region416: #{tpu_custom_call.1} parent=1 // pred_check
      _
    $region417: #{tpu_custom_call.1} parent=1 // pred_check_branch
      %695 = sbr.rel (0) target = $region419
    $region418: #{tpu_custom_call.1} parent=1 // pred_region
      %696 = vsyncadd %s650, 16
    $region419: #{tpu_custom_call.1} parent=1 // pred_fallthru
      _
    %s697 = scalar_lea.vmem %s3, %s647
    %s698 = scalar_lea.vmem [#allocation3], 6
    %s699 = scalar_lea.sflag [#allocation4], 14
    %p701 = scmp.lt.u32.totalorder 1, 8
    %p702 = pneg %p701
    // Predicated region
    $region420: #{tpu_custom_call.1} parent=1 // pred_check
      _
    $region421: #{tpu_custom_call.1} parent=1 // pred_check_branch
      %704 = sbr.rel (%p701) target = $region423
    $region422: #{tpu_custom_call.1} parent=1 // pred_region
      %s720 = sand.u32 1, 7
      %p721 = scmp.eq.s32.totalorder %s720, 0
      %p722 = pneg %p721
      // Predicated region
      $region435: #{tpu_custom_call.1} parent=422 // pred_check
        _
      $region436: #{tpu_custom_call.1} parent=422 // pred_check_branch
        %724 = sbr.rel (%p721) target = $region438
      $region437: #{tpu_custom_call.1} parent=422 // pred_region
        %s725 = sand.u32 1, 7
        %s726 = ssub.s32 1, %s725
        %s727 = scalar_lea.vmem %s697, %s726
        %s728 = ssub.s32 1, %s725
        %s729 = scalar_lea.vmem %s698, %s728 [#allocation3]
        %s730 = sshll.u32 1, %s725
        %s731 = ssub.s32 %s730, 1
        loop: start=0, step=1, limit=1
        $region439: #{tpu_custom_call.1} parent=437 // loop_pre_header
          _
        $region440: #{tpu_custom_call.1} parent=437 // loop_header
          %s733 = sphi 0, %s737
          %p734 = scmp.ge.s32.totalorder %s733, 1
          %s738 = sphi %s727, %s727
          %s739 = sphi %s729, %s729
        $region441: #{tpu_custom_call.1} parent=437 // loop_header_branch
          %736 = sbr.rel (%p734) target = $region445
        $region442: #{tpu_custom_call.1} parent=437 // loop_body
          %v740 = vld [vmem:[%s738] sm:%s731]
          %741 = vst [vmem:[%s739] sm:%s731] %v740
        $region443: #{tpu_custom_call.1} parent=437 // loop_footer
          %s737 = sadd.s32 1, %s733
        $region444: #{tpu_custom_call.1} parent=437 // loop_footer_branch
          %732 = sbr.rel target = $region440
        $region445: #{tpu_custom_call.1} parent=437 // loop_exit
          _
      $region438: #{tpu_custom_call.1} parent=422 // pred_fallthru
        _
    $region423: #{tpu_custom_call.1} parent=1 // pred_fallthru
      _
    // Predicated region
    $region424: #{tpu_custom_call.1} parent=1 // pred_check
      %p705 = pneg %p701
    $region425: #{tpu_custom_call.1} parent=1 // pred_check_branch
      %707 = sbr.rel (%p705) target = $region427
    $region426: #{tpu_custom_call.1} parent=1 // pred_region
      %s708 = sshll.u32 1, 1
      %s709 = ssub.s32 %s708, 1
      loop: start=0, step=1, limit=1
      $region428: #{tpu_custom_call.1} parent=426 // loop_pre_header
        _
      $region429: #{tpu_custom_call.1} parent=426 // loop_header
        %s711 = sphi 0, %s715
        %p712 = scmp.ge.s32.totalorder %s711, 1
        %s716 = sphi %s697, %s697
        %s717 = sphi %s698, %s698
      $region430: #{tpu_custom_call.1} parent=426 // loop_header_branch
        %714 = sbr.rel (%p712) target = $region434
      $region431: #{tpu_custom_call.1} parent=426 // loop_body
        %v718 = vld [vmem:[%s716] sm:%s709]
        %719 = vst [vmem:[%s717] sm:%s709] %v718
      $region432: #{tpu_custom_call.1} parent=426 // loop_footer
        %s715 = sadd.s32 1, %s711
      $region433: #{tpu_custom_call.1} parent=426 // loop_footer_branch
        %710 = sbr.rel target = $region429
      $region434: #{tpu_custom_call.1} parent=426 // loop_exit
        _
    $region427: #{tpu_custom_call.1} parent=1 // pred_fallthru
      _
    // Predicated region
    $region446: #{tpu_custom_call.1} parent=1 // pred_check
      _
    $region447: #{tpu_custom_call.1} parent=1 // pred_check_branch
      %744 = sbr.rel (0) target = $region449
    $region448: #{tpu_custom_call.1} parent=1 // pred_region
      %745 = vsyncadd %s699, 16
    $region449: #{tpu_custom_call.1} parent=1 // pred_fallthru
      _
    %s746 = sadd.s32 %s42, 7
    %s747 = sld [smem:[#allocation6 + %s746]]
    %s748 = sld [smem:[#allocation7 + %s746]]
    %s749 = scalar_lea.vmem %s2, %s747
    %s750 = scalar_lea.vmem [#allocation2], 7
    %s751 = scalar_lea.sflag [#allocation4], 7
    %p753 = scmp.lt.u32.totalorder 1, 8
    %p754 = pneg %p753
    // Predicated region
    $region450: #{tpu_custom_call.1} parent=1 // pred_check
      _
    $region451: #{tpu_custom_call.1} parent=1 // pred_check_branch
      %756 = sbr.rel (%p753) target = $region453
    $region452: #{tpu_custom_call.1} parent=1 // pred_region
      %s772 = sand.u32 1, 7
      %p773 = scmp.eq.s32.totalorder %s772, 0
      %p774 = pneg %p773
      // Predicated region
      $region465: #{tpu_custom_call.1} parent=452 // pred_check
        _
      $region466: #{tpu_custom_call.1} parent=452 // pred_check_branch
        %776 = sbr.rel (%p773) target = $region468
      $region467: #{tpu_custom_call.1} parent=452 // pred_region
        %s777 = sand.u32 1, 7
        %s778 = ssub.s32 1, %s777
        %s779 = scalar_lea.vmem %s749, %s778
        %s780 = ssub.s32 1, %s777
        %s781 = scalar_lea.vmem %s750, %s780 [#allocation2]
        %s782 = sshll.u32 1, %s777
        %s783 = ssub.s32 %s782, 1
        loop: start=0, step=1, limit=1
        $region469: #{tpu_custom_call.1} parent=467 // loop_pre_header
          _
        $region470: #{tpu_custom_call.1} parent=467 // loop_header
          %s785 = sphi 0, %s789
          %p786 = scmp.ge.s32.totalorder %s785, 1
          %s790 = sphi %s779, %s779
          %s791 = sphi %s781, %s781
        $region471: #{tpu_custom_call.1} parent=467 // loop_header_branch
          %788 = sbr.rel (%p786) target = $region475
        $region472: #{tpu_custom_call.1} parent=467 // loop_body
          %v792 = vld [vmem:[%s790] sm:%s783]
          %793 = vst [vmem:[%s791] sm:%s783] %v792
        $region473: #{tpu_custom_call.1} parent=467 // loop_footer
          %s789 = sadd.s32 1, %s785
        $region474: #{tpu_custom_call.1} parent=467 // loop_footer_branch
          %784 = sbr.rel target = $region470
        $region475: #{tpu_custom_call.1} parent=467 // loop_exit
          _
      $region468: #{tpu_custom_call.1} parent=452 // pred_fallthru
        _
    $region453: #{tpu_custom_call.1} parent=1 // pred_fallthru
      _
    // Predicated region
    $region454: #{tpu_custom_call.1} parent=1 // pred_check
      %p757 = pneg %p753
    $region455: #{tpu_custom_call.1} parent=1 // pred_check_branch
      %759 = sbr.rel (%p757) target = $region457
    $region456: #{tpu_custom_call.1} parent=1 // pred_region
      %s760 = sshll.u32 1, 1
      %s761 = ssub.s32 %s760, 1
      loop: start=0, step=1, limit=1
      $region458: #{tpu_custom_call.1} parent=456 // loop_pre_header
        _
      $region459: #{tpu_custom_call.1} parent=456 // loop_header
        %s763 = sphi 0, %s767
        %p764 = scmp.ge.s32.totalorder %s763, 1
        %s768 = sphi %s749, %s749
        %s769 = sphi %s750, %s750
      $region460: #{tpu_custom_call.1} parent=456 // loop_header_branch
        %766 = sbr.rel (%p764) target = $region464
      $region461: #{tpu_custom_call.1} parent=456 // loop_body
        %v770 = vld [vmem:[%s768] sm:%s761]
        %771 = vst [vmem:[%s769] sm:%s761] %v770
      $region462: #{tpu_custom_call.1} parent=456 // loop_footer
        %s767 = sadd.s32 1, %s763
      $region463: #{tpu_custom_call.1} parent=456 // loop_footer_branch
        %762 = sbr.rel target = $region459
      $region464: #{tpu_custom_call.1} parent=456 // loop_exit
        _
    $region457: #{tpu_custom_call.1} parent=1 // pred_fallthru
      _
    // Predicated region
    $region476: #{tpu_custom_call.1} parent=1 // pred_check
      _
    $region477: #{tpu_custom_call.1} parent=1 // pred_check_branch
      %796 = sbr.rel (0) target = $region479
    $region478: #{tpu_custom_call.1} parent=1 // pred_region
      %797 = vsyncadd %s751, 16
    $region479: #{tpu_custom_call.1} parent=1 // pred_fallthru
      _
    %s798 = scalar_lea.vmem %s3, %s748
    %s799 = scalar_lea.vmem [#allocation3], 7
    %s800 = scalar_lea.sflag [#allocation4], 15
    %p802 = scmp.lt.u32.totalorder 1, 8
    %p803 = pneg %p802
    // Predicated region
    $region480: #{tpu_custom_call.1} parent=1 // pred_check
      _
    $region481: #{tpu_custom_call.1} parent=1 // pred_check_branch
      %805 = sbr.rel (%p802) target = $region483
    $region482: #{tpu_custom_call.1} parent=1 // pred_region
      %s821 = sand.u32 1, 7
      %p822 = scmp.eq.s32.totalorder %s821, 0
      %p823 = pneg %p822
      // Predicated region
      $region495: #{tpu_custom_call.1} parent=482 // pred_check
        _
      $region496: #{tpu_custom_call.1} parent=482 // pred_check_branch
        %825 = sbr.rel (%p822) target = $region498
      $region497: #{tpu_custom_call.1} parent=482 // pred_region
        %s826 = sand.u32 1, 7
        %s827 = ssub.s32 1, %s826
        %s828 = scalar_lea.vmem %s798, %s827
        %s829 = ssub.s32 1, %s826
        %s830 = scalar_lea.vmem %s799, %s829 [#allocation3]
        %s831 = sshll.u32 1, %s826
        %s832 = ssub.s32 %s831, 1
        loop: start=0, step=1, limit=1
        $region499: #{tpu_custom_call.1} parent=497 // loop_pre_header
          _
        $region500: #{tpu_custom_call.1} parent=497 // loop_header
          %s834 = sphi 0, %s838
          %p835 = scmp.ge.s32.totalorder %s834, 1
          %s839 = sphi %s828, %s828
          %s840 = sphi %s830, %s830
        $region501: #{tpu_custom_call.1} parent=497 // loop_header_branch
          %837 = sbr.rel (%p835) target = $region505
        $region502: #{tpu_custom_call.1} parent=497 // loop_body
          %v841 = vld [vmem:[%s839] sm:%s832]
          %842 = vst [vmem:[%s840] sm:%s832] %v841
        $region503: #{tpu_custom_call.1} parent=497 // loop_footer
          %s838 = sadd.s32 1, %s834
        $region504: #{tpu_custom_call.1} parent=497 // loop_footer_branch
          %833 = sbr.rel target = $region500
        $region505: #{tpu_custom_call.1} parent=497 // loop_exit
          _
      $region498: #{tpu_custom_call.1} parent=482 // pred_fallthru
        _
    $region483: #{tpu_custom_call.1} parent=1 // pred_fallthru
      _
    // Predicated region
    $region484: #{tpu_custom_call.1} parent=1 // pred_check
      %p806 = pneg %p802
    $region485: #{tpu_custom_call.1} parent=1 // pred_check_branch
      %808 = sbr.rel (%p806) target = $region487
    $region486: #{tpu_custom_call.1} parent=1 // pred_region
      %s809 = sshll.u32 1, 1
      %s810 = ssub.s32 %s809, 1
      loop: start=0, step=1, limit=1
      $region488: #{tpu_custom_call.1} parent=486 // loop_pre_header
        _
      $region489: #{tpu_custom_call.1} parent=486 // loop_header
        %s812 = sphi 0, %s816
        %p813 = scmp.ge.s32.totalorder %s812, 1
        %s817 = sphi %s798, %s798
        %s818 = sphi %s799, %s799
      $region490: #{tpu_custom_call.1} parent=486 // loop_header_branch
        %815 = sbr.rel (%p813) target = $region494
      $region491: #{tpu_custom_call.1} parent=486 // loop_body
        %v819 = vld [vmem:[%s817] sm:%s810]
        %820 = vst [vmem:[%s818] sm:%s810] %v819
      $region492: #{tpu_custom_call.1} parent=486 // loop_footer
        %s816 = sadd.s32 1, %s812
      $region493: #{tpu_custom_call.1} parent=486 // loop_footer_branch
        %811 = sbr.rel target = $region489
      $region494: #{tpu_custom_call.1} parent=486 // loop_exit
        _
    $region487: #{tpu_custom_call.1} parent=1 // pred_fallthru
      _
    // Predicated region
    $region506: #{tpu_custom_call.1} parent=1 // pred_check
      _
    $region507: #{tpu_custom_call.1} parent=1 // pred_check_branch
      %845 = sbr.rel (0) target = $region509
    $region508: #{tpu_custom_call.1} parent=1 // pred_region
      %846 = vsyncadd %s800, 16
    $region509: #{tpu_custom_call.1} parent=1 // pred_fallthru
      _
    %s847 = smul.u32 1, 1
    %s848 = sshll.u32 %s847, 4
    %849 = dma.done [#allocation4], %s848
    %s850 = sshll.u32 %s847, 4
    %851 = dma.done %s93, %s850
    %s852 = sshll.u32 %s847, 4
    %853 = dma.done %s145, %s852
    %s854 = sshll.u32 %s847, 4
    %855 = dma.done %s194, %s854
    %s856 = sshll.u32 %s847, 4
    %857 = dma.done %s246, %s856
    %s858 = sshll.u32 %s847, 4
    %859 = dma.done %s295, %s858
    %s860 = sshll.u32 %s847, 4
    %861 = dma.done %s347, %s860
    %s862 = sshll.u32 %s847, 4
    %863 = dma.done %s396, %s862
    %s864 = sshll.u32 %s847, 4
    %865 = dma.done %s448, %s864
    %s866 = sshll.u32 %s847, 4
    %867 = dma.done %s497, %s866
    %s868 = sshll.u32 %s847, 4
    %869 = dma.done %s549, %s868
    %s870 = sshll.u32 %s847, 4
    %871 = dma.done %s598, %s870
    %s872 = sshll.u32 %s847, 4
    %873 = dma.done %s650, %s872
    %s874 = sshll.u32 %s847, 4
    %875 = dma.done %s699, %s874
    %s876 = sshll.u32 %s847, 4
    %877 = dma.done %s751, %s876
    %s878 = sshll.u32 %s847, 4
    %879 = dma.done %s800, %s878
    %v880 = vld [vmem:[#allocation2] sm:$0xff]
    %v881 = vld [vmem:[%s4] sm:$0xff]
    %v882 = vld [vmem:[%s4 + $0x8] sm:$0xff]
    %v883 = vld [vmem:[%s4 + $0x10] sm:$0xff]
    %v884 = vld [vmem:[%s4 + $0x18] sm:$0xff]
    %v885 = vld [vmem:[#allocation3] sm:$0xff]
    %v886 = vld [vmem:[%s5] sm:$0xff]
    %v887 = vld [vmem:[%s5 + $0x8] sm:$0xff]
    %v888 = vld [vmem:[%s5 + $0x10] sm:$0xff]
    %v889 = vld [vmem:[%s5 + $0x18] sm:$0xff]
    %vm890 = vcmask 261120
    %v892 = vsel %vm890, %v885, 0
    %894 = vmatprep.subr.mxu0 0.0
    %895 = vmatpush1.msra.mxu0 0.0
    %896 = vmatprep.subr.mxu0 0.0
    %897 = vmatpush1.msra.mxu0 0.0
    %898 = vmatprep.subr.mxu0 0.0
    %899 = vmatpush1.msra.mxu0 0.0
    %900 = vmatprep.subr.mxu0 0.0
    %901 = vmatpush1.msra.mxu0 0.0
    %902 = vmatprep.subr.mxu0 0.0
    %903 = vmatpush1.msra.mxu0 0.0
    %904 = vmatprep.subr.mxu0 0.0
    %905 = vmatpush1.msra.mxu0 0.0
    %906 = vmatprep.subr.mxu0 0.0
    %907 = vmatpush1.msra.mxu0 0.0
    %908 = vmatprep.subr.mxu0 0.0
    %909 = vmatpush1.msra.mxu0 0.0
    %910 = vmatprep.subr.mxu0 0.0
    %911 = vmatpush1.msra.mxu0 0.0
    %912 = vmatprep.subr.mxu0 0.0
    %913 = vmatpush1.msra.mxu0 0.0
    %914 = vmatprep.subr.mxu0 0.0
    %915 = vmatpush1.msra.mxu0 0.0
    %916 = vmatprep.subr.mxu0 0.0
    %917 = vmatpush1.msra.mxu0 0.0
    %918 = vmatprep.subr.mxu0 0.0
    %919 = vmatpush1.msra.mxu0 %v889
    %920 = vmatprep.subr.mxu0 0.0
    %921 = vmatpush1.msra.mxu0 %v888
    %922 = vmatprep.subr.mxu0 0.0
    %923 = vmatpush1.msra.mxu0 %v887
    %924 = vmatprep.subr.mxu0 0.0
    %925 = vmatpush1.msra.mxu0 %v886
    %926 = vmatprep.subr.mxu0 0.0
    %927 = vmatpush2.msra.mxu0 0.0
    %928 = vmatprep.subr.mxu0 0.0
    %929 = vmatpush2.msra.mxu0 0.0
    %930 = vmatprep.subr.mxu0 0.0
    %931 = vmatpush2.msra.mxu0 0.0
    %932 = vmatprep.subr.mxu0 0.0
    %933 = vmatpush2.msra.mxu0 0.0
    %934 = vmatprep.subr.mxu0 0.0
    %935 = vmatpush2.msra.mxu0 0.0
    %936 = vmatprep.subr.mxu0 0.0
    %937 = vmatpush2.msra.mxu0 0.0
    %938 = vmatprep.subr.mxu0 0.0
    %939 = vmatpush2.msra.mxu0 0.0
    %940 = vmatprep.subr.mxu0 0.0
    %941 = vmatpush2.msra.mxu0 0.0
    %942 = vmatprep.subr.mxu0 0.0
    %943 = vmatpush2.msra.mxu0 0.0
    %944 = vmatprep.subr.mxu0 0.0
    %945 = vmatpush2.msra.mxu0 0.0
    %946 = vmatprep.subr.mxu0 0.0
    %947 = vmatpush2.msra.mxu0 0.0
    %948 = vmatprep.subr.mxu0 0.0
    %949 = vmatpush2.msra.mxu0 0.0
    %950 = vmatprep.subr.mxu0 0.0
    %951 = vmatpush2.msra.mxu0 0.0
    %952 = vmatprep.subr.mxu0 0.0
    %953 = vmatpush2.msra.mxu0 0.0
    %954 = vmatprep.subr.mxu0 0.0
    %955 = vmatpush2.msra.mxu0 0.0
    %956 = vmatprep.subr.mxu0 0.0
    %957 = vmatpush2.msra.mxu0 0.0
    %958 = vmatprep.mubr.f32.mxu0 0.0
    %959 = vmatmul.mubr.f32.gmra.mxu0 %v892
    %v960 = vpop.f32.mrf.mxu0
    %v961 = vadd.f32 0.0, %v960
    %v962 = vpop.f32.mrf.mxu0
    %963 = vdwg.mxu0
    %v965 = vsel %vm890, %v880, 0
    %967 = vmatprep.subr.mxu0 0.0
    %968 = vmatpush1.msra.mxu0 0.0
    %969 = vmatprep.subr.mxu0 0.0
    %970 = vmatpush1.msra.mxu0 0.0
    %971 = vmatprep.subr.mxu0 0.0
    %972 = vmatpush1.msra.mxu0 0.0
    %973 = vmatprep.subr.mxu0 0.0
    %974 = vmatpush1.msra.mxu0 0.0
    %975 = vmatprep.subr.mxu0 0.0
    %976 = vmatpush1.msra.mxu0 0.0
    %977 = vmatprep.subr.mxu0 0.0
    %978 = vmatpush1.msra.mxu0 0.0
    %979 = vmatprep.subr.mxu0 0.0
    %980 = vmatpush1.msra.mxu0 0.0
    %981 = vmatprep.subr.mxu0 0.0
    %982 = vmatpush1.msra.mxu0 0.0
    %983 = vmatprep.subr.mxu0 0.0
    %984 = vmatpush1.msra.mxu0 0.0
    %985 = vmatprep.subr.mxu0 0.0
    %986 = vmatpush1.msra.mxu0 0.0
    %987 = vmatprep.subr.mxu0 0.0
    %988 = vmatpush1.msra.mxu0 0.0
    %989 = vmatprep.subr.mxu0 0.0
    %990 = vmatpush1.msra.mxu0 0.0
    %991 = vmatprep.subr.mxu0 0.0
    %992 = vmatpush1.msra.mxu0 %v884
    %993 = vmatprep.subr.mxu0 0.0
    %994 = vmatpush1.msra.mxu0 %v883
    %995 = vmatprep.subr.mxu0 0.0
    %996 = vmatpush1.msra.mxu0 %v882
    %997 = vmatprep.subr.mxu0 0.0
    %998 = vmatpush1.msra.mxu0 %v881
    %999 = vmatprep.subr.mxu0 0.0
    %1000 = vmatpush2.msra.mxu0 0.0
    %1001 = vmatprep.subr.mxu0 0.0
    %1002 = vmatpush2.msra.mxu0 0.0
    %1003 = vmatprep.subr.mxu0 0.0
    %1004 = vmatpush2.msra.mxu0 0.0
    %1005 = vmatprep.subr.mxu0 0.0
    %1006 = vmatpush2.msra.mxu0 0.0
    %1007 = vmatprep.subr.mxu0 0.0
    %1008 = vmatpush2.msra.mxu0 0.0
    %1009 = vmatprep.subr.mxu0 0.0
    %1010 = vmatpush2.msra.mxu0 0.0
    %1011 = vmatprep.subr.mxu0 0.0
    %1012 = vmatpush2.msra.mxu0 0.0
    %1013 = vmatprep.subr.mxu0 0.0
    %1014 = vmatpush2.msra.mxu0 0.0
    %1015 = vmatprep.subr.mxu0 0.0
    %1016 = vmatpush2.msra.mxu0 0.0
    %1017 = vmatprep.subr.mxu0 0.0
    %1018 = vmatpush2.msra.mxu0 0.0
    %1019 = vmatprep.subr.mxu0 0.0
    %1020 = vmatpush2.msra.mxu0 0.0
    %1021 = vmatprep.subr.mxu0 0.0
    %1022 = vmatpush2.msra.mxu0 0.0
    %1023 = vmatprep.subr.mxu0 0.0
    %1024 = vmatpush2.msra.mxu0 0.0
    %1025 = vmatprep.subr.mxu0 0.0
    %1026 = vmatpush2.msra.mxu0 0.0
    %1027 = vmatprep.subr.mxu0 0.0
    %1028 = vmatpush2.msra.mxu0 0.0
    %1029 = vmatprep.subr.mxu0 0.0
    %1030 = vmatpush2.msra.mxu0 0.0
    %1031 = vmatprep.mubr.f32.mxu0 0.0
    %1032 = vmatmul.mubr.f32.gmra.mxu0 %v965
    %v1033 = vpop.f32.mrf.mxu0
    %v1034 = vadd.f32 %v961, %v1033
    %v1035 = vpop.f32.mrf.mxu0
    %1036 = vdwg.mxu0
    %v1037 = vld [vmem:[%s6] sm:$0x1]
    %v1039 = vlaneseq
    %v1040 = vshrl.u32 %v1039, 7
    %v1041 = vsub.s32 0, %v1040
    %v1042 = vrot.slane %v1037, %v1041
    %v1044 = vadd.f32 %v1034, %v1042
    %v1045 = vmax.f32 %v1044, 0.0
    %v1046 = vld [vmem:[%s7] sm:$0xff]
    %v1047 = vld [vmem:[%s7 + $0x8] sm:$0xff]
    %v1048 = vld [vmem:[%s7 + $0x10] sm:$0xff]
    %v1049 = vld [vmem:[%s7 + $0x18] sm:$0xff]
    %v1050 = vld [vmem:[%s7 + $0x20] sm:$0xff]
    %v1051 = vld [vmem:[%s7 + $0x28] sm:$0xff]
    %v1052 = vld [vmem:[%s7 + $0x30] sm:$0xff]
    %v1053 = vld [vmem:[%s7 + $0x38] sm:$0xff]
    %v1054 = vld [vmem:[%s8] sm:$0x1]
    %v1056 = vlaneseq
    %v1057 = vshrl.u32 %v1056, 7
    %v1058 = vsub.s32 0, %v1057
    %v1059 = vrot.slane %v1054, %v1058
    %vm1061 = vcmask 523264
    %v1063 = vsel %vm1061, %v1045, 0
    %1065 = vmatprep.subr.mxu0 0.0
    %1066 = vmatpush1.msra.mxu0 0.0
    %1067 = vmatprep.subr.mxu0 0.0
    %1068 = vmatpush1.msra.mxu0 0.0
    %1069 = vmatprep.subr.mxu0 0.0
    %1070 = vmatpush1.msra.mxu0 0.0
    %1071 = vmatprep.subr.mxu0 0.0
    %1072 = vmatpush1.msra.mxu0 0.0
    %1073 = vmatprep.subr.mxu0 0.0
    %1074 = vmatpush1.msra.mxu0 0.0
    %1075 = vmatprep.subr.mxu0 0.0
    %1076 = vmatpush1.msra.mxu0 0.0
    %1077 = vmatprep.subr.mxu0 0.0
    %1078 = vmatpush1.msra.mxu0 0.0
    %1079 = vmatprep.subr.mxu0 0.0
    %1080 = vmatpush1.msra.mxu0 0.0
    %1081 = vmatprep.subr.mxu0 0.0
    %1082 = vmatpush1.msra.mxu0 %v1053
    %1083 = vmatprep.subr.mxu0 0.0
    %1084 = vmatpush1.msra.mxu0 %v1052
    %1085 = vmatprep.subr.mxu0 0.0
    %1086 = vmatpush1.msra.mxu0 %v1051
    %1087 = vmatprep.subr.mxu0 0.0
    %1088 = vmatpush1.msra.mxu0 %v1050
    %1089 = vmatprep.subr.mxu0 0.0
    %1090 = vmatpush1.msra.mxu0 %v1049
    %1091 = vmatprep.subr.mxu0 0.0
    %1092 = vmatpush1.msra.mxu0 %v1048
    %1093 = vmatprep.subr.mxu0 0.0
    %1094 = vmatpush1.msra.mxu0 %v1047
    %1095 = vmatprep.subr.mxu0 0.0
    %1096 = vmatpush1.msra.mxu0 %v1046
    %1097 = vmatprep.subr.mxu0 0.0
    %1098 = vmatpush2.msra.mxu0 0.0
    %1099 = vmatprep.subr.mxu0 0.0
    %1100 = vmatpush2.msra.mxu0 0.0
    %1101 = vmatprep.subr.mxu0 0.0
    %1102 = vmatpush2.msra.mxu0 0.0
    %1103 = vmatprep.subr.mxu0 0.0
    %1104 = vmatpush2.msra.mxu0 0.0
    %1105 = vmatprep.subr.mxu0 0.0
    %1106 = vmatpush2.msra.mxu0 0.0
    %1107 = vmatprep.subr.mxu0 0.0
    %1108 = vmatpush2.msra.mxu0 0.0
    %1109 = vmatprep.subr.mxu0 0.0
    %1110 = vmatpush2.msra.mxu0 0.0
    %1111 = vmatprep.subr.mxu0 0.0
    %1112 = vmatpush2.msra.mxu0 0.0
    %1113 = vmatprep.subr.mxu0 0.0
    %1114 = vmatpush2.msra.mxu0 0.0
    %1115 = vmatprep.subr.mxu0 0.0
    %1116 = vmatpush2.msra.mxu0 0.0
    %1117 = vmatprep.subr.mxu0 0.0
    %1118 = vmatpush2.msra.mxu0 0.0
    %1119 = vmatprep.subr.mxu0 0.0
    %1120 = vmatpush2.msra.mxu0 0.0
    %1121 = vmatprep.subr.mxu0 0.0
    %1122 = vmatpush2.msra.mxu0 0.0
    %1123 = vmatprep.subr.mxu0 0.0
    %1124 = vmatpush2.msra.mxu0 0.0
    %1125 = vmatprep.subr.mxu0 0.0
    %1126 = vmatpush2.msra.mxu0 0.0
    %1127 = vmatprep.subr.mxu0 0.0
    %1128 = vmatpush2.msra.mxu0 0.0
    %1129 = vmatprep.mubr.f32.mxu0 0.0
    %1130 = vmatmul.mubr.f32.gmra.mxu0 %v1063
    %v1131 = vpop.f32.mrf.mxu0
    %v1132 = vadd.f32 %v1059, %v1131
    %v1133 = vpop.f32.mrf.mxu0
    %1134 = vdwg.mxu0
    %v1135 = vmax.f32 %v1132, 0.0
    %v1136 = vld [vmem:[%s9] sm:$0x1]
    %s1137 = sld [smem:[#allocation8]]
    %v1138 = vstv %s1137
    %v1140 = vsel %vm890, %v1136, 0
    %v1143 = vsel %vm890, %v1135, 0
    %1145 = vmatprep.subr.mxu0 0.0
    %1146 = vmatpush1.xpose.msra.mxu0 0.0
    %1147 = vmatprep.subr.mxu0 0.0
    %1148 = vmatpush1.xpose.msra.mxu0 0.0
    %1149 = vmatprep.subr.mxu0 0.0
    %1150 = vmatpush1.xpose.msra.mxu0 0.0
    %1151 = vmatprep.subr.mxu0 0.0
    %1152 = vmatpush1.xpose.msra.mxu0 0.0
    %1153 = vmatprep.subr.mxu0 0.0
    %1154 = vmatpush1.xpose.msra.mxu0 0.0
    %1155 = vmatprep.subr.mxu0 0.0
    %1156 = vmatpush1.xpose.msra.mxu0 0.0
    %1157 = vmatprep.subr.mxu0 0.0
    %1158 = vmatpush1.xpose.msra.mxu0 0.0
    %1159 = vmatprep.subr.mxu0 0.0
    %1160 = vmatpush1.xpose.msra.mxu0 0.0
    %1161 = vmatprep.subr.mxu0 0.0
    %1162 = vmatpush1.xpose.msra.mxu0 0.0
    %1163 = vmatprep.subr.mxu0 0.0
    %1164 = vmatpush1.xpose.msra.mxu0 0.0
    %1165 = vmatprep.subr.mxu0 0.0
    %1166 = vmatpush1.xpose.msra.mxu0 0.0
    %1167 = vmatprep.subr.mxu0 0.0
    %1168 = vmatpush1.xpose.msra.mxu0 0.0
    %1169 = vmatprep.subr.mxu0 0.0
    %1170 = vmatpush1.xpose.msra.mxu0 0.0
    %1171 = vmatprep.subr.mxu0 0.0
    %1172 = vmatpush1.xpose.msra.mxu0 0.0
    %1173 = vmatprep.subr.mxu0 0.0
    %1174 = vmatpush1.xpose.msra.mxu0 0.0
    %1175 = vmatprep.subr.mxu0 0.0
    %1176 = vmatpush1.xpose.msra.mxu0 %v1143
    %1177 = vmatprep.subr.mxu0 0.0
    %1178 = vmatpush2.xpose.msra.mxu0 0.0
    %1179 = vmatprep.subr.mxu0 0.0
    %1180 = vmatpush2.xpose.msra.mxu0 0.0
    %1181 = vmatprep.subr.mxu0 0.0
    %1182 = vmatpush2.xpose.msra.mxu0 0.0
    %1183 = vmatprep.subr.mxu0 0.0
    %1184 = vmatpush2.xpose.msra.mxu0 0.0
    %1185 = vmatprep.subr.mxu0 0.0
    %1186 = vmatpush2.xpose.msra.mxu0 0.0
    %1187 = vmatprep.subr.mxu0 0.0
    %1188 = vmatpush2.xpose.msra.mxu0 0.0
    %1189 = vmatprep.subr.mxu0 0.0
    %1190 = vmatpush2.xpose.msra.mxu0 0.0
    %1191 = vmatprep.subr.mxu0 0.0
    %1192 = vmatpush2.xpose.msra.mxu0 0.0
    %1193 = vmatprep.subr.mxu0 0.0
    %1194 = vmatpush2.xpose.msra.mxu0 0.0
    %1195 = vmatprep.subr.mxu0 0.0
    %1196 = vmatpush2.xpose.msra.mxu0 0.0
    %1197 = vmatprep.subr.mxu0 0.0
    %1198 = vmatpush2.xpose.msra.mxu0 0.0
    %1199 = vmatprep.subr.mxu0 0.0
    %1200 = vmatpush2.xpose.msra.mxu0 0.0
    %1201 = vmatprep.subr.mxu0 0.0
    %1202 = vmatpush2.xpose.msra.mxu0 0.0
    %1203 = vmatprep.subr.mxu0 0.0
    %1204 = vmatpush2.xpose.msra.mxu0 0.0
    %1205 = vmatprep.subr.mxu0 0.0
    %1206 = vmatpush2.xpose.msra.mxu0 0.0
    %1207 = vmatprep.subr.mxu0 0.0
    %1208 = vmatpush2.xpose.msra.mxu0 0.0
    %1209 = vmatprep.mubr.f32.mxu0 0.0
    %1210 = vmatmul.mubr.f32.gmra.mxu0 %v1140
    %v1211 = vpop.f32.mrf.mxu0
    %v1212 = vadd.f32 %v1138, %v1211
    %v1213 = vpop.f32.mrf.mxu0
    %1214 = vdwg.mxu0
    %v1215 = vxor.u32 %v1212, 2147483648
    %v1216 = vmul.f32 %v1215, 1.442695
    %v1217 = vpow.pop %v1216
    %v1218 = vadd.f32 %v1217, 1.0
    %v1219 = vrcp.pop %v1218
    %v1220 = vmul.f32 1.0, %v1219
    %v1221 = vmul.f32 %v1220, 4.0
    %v1222 = vadd.f32 %v1221, 1.0
    %vm1223 = vcmask 57344
    %1224 = vst.msk [vmem:[#allocation9] sm:$0x1] %vm1223, %v1222
    // Predicated region
    $region510: #{tpu_custom_call.1} parent=1 // pred_check
      _
    $region511: #{tpu_custom_call.1} parent=1 // pred_check_branch
      %1226 = sbr.rel (0) target = $region513
    $region512: #{tpu_custom_call.1} parent=1 // pred_region
      %s1228 = ssub.s32 16, 16
      %1229 = vsyncadd [#allocation10], %s1228
      %s1231 = sshll.u32 [#allocation9], 4
      %s1232 = int_to_ptr.vmem [resolvable:$true] %s1231
      %1234 = dma.vmem_to_hbm [thread:$0]  %s1232, 16, %s11, [#allocation10]
    $region513: #{tpu_custom_call.1} parent=1 // pred_fallthru
      _
    // Predicated region
    $region514: #{tpu_custom_call.1} parent=1 // pred_check
      _
    $region515: #{tpu_custom_call.1} parent=1 // pred_check_branch
      %1236 = sbr.rel (0) target = $region517
    $region516: #{tpu_custom_call.1} parent=1 // pred_region
      %1237 = dma.done [#allocation10], 16
    $region517: #{tpu_custom_call.1} parent=1 // pred_fallthru
      _
    %1238 = vsyncpa [#allocation10], 1
  %1239 = vsyncmov [#allocation4]
  %s1240 = vpop.sfrf %1239
  %p1241 = scmp.eq.s32.totalorder %s1240, 0
  %p1242 = pneg %p1241
  %1244 = shalt.err (%p1242)
  %s1245 = scalar_lea.sflag [#allocation4], 1
  %1246 = vsyncmov %s1245
  %s1247 = vpop.sfrf %1246
  %p1248 = scmp.eq.s32.totalorder %s1247, 0
  %p1249 = pneg %p1248
  %1251 = shalt.err (%p1249)
  %s1252 = scalar_lea.sflag [#allocation4], 2
  %1253 = vsyncmov %s1252
  %s1254 = vpop.sfrf %1253
  %p1255 = scmp.eq.s32.totalorder %s1254, 0
  %p1256 = pneg %p1255
  %1258 = shalt.err (%p1256)
  %s1259 = scalar_lea.sflag [#allocation4], 3
  %1260 = vsyncmov %s1259
  %s1261 = vpop.sfrf %1260
  %p1262 = scmp.eq.s32.totalorder %s1261, 0
  %p1263 = pneg %p1262
  %1265 = shalt.err (%p1263)
  %s1266 = scalar_lea.sflag [#allocation4], 4
  %1267 = vsyncmov %s1266
  %s1268 = vpop.sfrf %1267
  %p1269 = scmp.eq.s32.totalorder %s1268, 0
  %p1270 = pneg %p1269
  %1272 = shalt.err (%p1270)
  %s1273 = scalar_lea.sflag [#allocation4], 5
  %1274 = vsyncmov %s1273
  %s1275 = vpop.sfrf %1274
  %p1276 = scmp.eq.s32.totalorder %s1275, 0
  %p1277 = pneg %p1276
  %1279 = shalt.err (%p1277)
  %s1280 = scalar_lea.sflag [#allocation4], 6
  %1281 = vsyncmov %s1280
  %s1282 = vpop.sfrf %1281
  %p1283 = scmp.eq.s32.totalorder %s1282, 0
  %p1284 = pneg %p1283
  %1286 = shalt.err (%p1284)
  %s1287 = scalar_lea.sflag [#allocation4], 7
  %1288 = vsyncmov %s1287
  %s1289 = vpop.sfrf %1288
  %p1290 = scmp.eq.s32.totalorder %s1289, 0
  %p1291 = pneg %p1290
  %1293 = shalt.err (%p1291)
  %s1294 = scalar_lea.sflag [#allocation4], 8
  %1295 = vsyncmov %s1294
  %s1296 = vpop.sfrf %1295
  %p1297 = scmp.eq.s32.totalorder %s1296, 0
  %p1298 = pneg %p1297
  %1300 = shalt.err (%p1298)
  %s1301 = scalar_lea.sflag [#allocation4], 9
  %1302 = vsyncmov %s1301
  %s1303 = vpop.sfrf %1302
  %p1304 = scmp.eq.s32.totalorder %s1303, 0
  %p1305 = pneg %p1304
  %1307 = shalt.err (%p1305)
  %s1308 = scalar_lea.sflag [#allocation4], 10
  %1309 = vsyncmov %s1308
  %s1310 = vpop.sfrf %1309
  %p1311 = scmp.eq.s32.totalorder %s1310, 0
  %p1312 = pneg %p1311
  %1314 = shalt.err (%p1312)
  %s1315 = scalar_lea.sflag [#allocation4], 11
  %1316 = vsyncmov %s1315
  %s1317 = vpop.sfrf %1316
  %p1318 = scmp.eq.s32.totalorder %s1317, 0
  %p1319 = pneg %p1318
  %1321 = shalt.err (%p1319)
  %s1322 = scalar_lea.sflag [#allocation4], 12
  %1323 = vsyncmov %s1322
  %s1324 = vpop.sfrf %1323
  %p1325 = scmp.eq.s32.totalorder %s1324, 0
  %p1326 = pneg %p1325
  %1328 = shalt.err (%p1326)
  %s1329 = scalar_lea.sflag [#allocation4], 13
  %1330 = vsyncmov %s1329
  %s1331 = vpop.sfrf %1330
  %p1332 = scmp.eq.s32.totalorder %s1331, 0
  %p1333 = pneg %p1332
  %1335 = shalt.err (%p1333)
  %s1336 = scalar_lea.sflag [#allocation4], 14
  %1337 = vsyncmov %s1336
  %s1338 = vpop.sfrf %1337
  %p1339 = scmp.eq.s32.totalorder %s1338, 0
  %p1340 = pneg %p1339
  %1342 = shalt.err (%p1340)
  %s1343 = scalar_lea.sflag [#allocation4], 15
  %1344 = vsyncmov %s1343
  %s1345 = vpop.sfrf %1344
  %p1346 = scmp.eq.s32.totalorder %s1345, 0
  %p1347 = pneg %p1346
  %1349 = shalt.err (%p1347)

</llo_original>
